<compile_context>
chip_gen: v7x
topology: tpu7x:2x2x1
jax: 0.10.0
libtpu: 0.0.40
codegen_flags: <defaults>
</compile_context>

<pallas_src>
import functools

import jax
import jax.numpy as jnp
from jax.experimental import pallas as pl
from jax.experimental.pallas import tpu as pltpu

ALPHABET_SIZE = 256
TAGPAD = 128                      # lane-dense padded tag width


def _ru8(n):
    return (n + 7) // 8 * 8


# ------------------------------ fused kernel --------------------------------
def pos_tagger_kernel(idx_ref, tabs_ref, wts_ref, biases_ref, out_ref, *,
                      BS, SL, WL, WD, CD, K, H, VOCAB_P, ALPHA_P):
    f32, bf16 = jnp.float32, jnp.bfloat16
    SLBS = SL * BS
    T = WL - K + 1                    # valid-conv output length
    E = WD + CD
    G4 = 4 * H
    NIDX = idx_ref.shape[0]           # SLBS + WL*SLBS
    NTAB = tabs_ref.shape[0]
    conv_base = VOCAB_P + ALPHA_P

    # ---- 1. single fused embedding gather (word rows + char rows) ----------
    ids = idx_ref[...]                                                 # (NIDX, 1) i32
    oh = (jax.lax.broadcasted_iota(jnp.int32, (NIDX, NTAB), 1)
          == ids).astype(bf16)                                         # (NIDX, NTAB)
    emb = jnp.dot(oh, tabs_ref[...], preferred_element_type=f32)       # (NIDX, CMAX)
    w_emb = emb[0:SLBS, 0:WD]                                          # (SLBS, WD)
    e_char = emb[SLBS:SLBS + WL * SLBS, 0:CD].astype(bf16)             # exact recast

    # ---- 2. char CNN: K shifted row-slabs -> ONE matmul, ReLU, max-over-t --
    x_cat = jnp.concatenate(
        [e_char[k * SLBS:(k + T) * SLBS, :] for k in range(K)], axis=1)  # (T*SLBS, K*CD)
    w_cat = tabs_ref[conv_base:conv_base + K * CD, 0:CD]               # (K*CD, CD) bf16
    acc = jnp.dot(x_cat, w_cat, preferred_element_type=f32)            # (T*SLBS, CD)
    acc = jnp.maximum(acc + biases_ref[0:1, 0:CD], 0.0)                # ReLU
    c_feat = acc[0:SLBS, :]
    for t in range(1, T):
        c_feat = jnp.maximum(c_feat, acc[t * SLBS:(t + 1) * SLBS, :])  # (SLBS, CD)

    # ---- 3. hoisted LSTM input projections: fwd & rev in ONE matmul --------
    x = jnp.concatenate([w_emb, c_feat], axis=1)                       # (SLBS, E)
    gi = (jnp.dot(x, wts_ref[0:E, :], preferred_element_type=f32)
          + biases_ref[1:2, :])                                        # (SLBS, 8H)
    gi_f, gi_r = gi[:, 0:G4], gi[:, G4:2 * G4]

    # interleave fwd time t with rev time SL-1-t -> one static slice per step
    gi_comb = jnp.concatenate(
        [blk for t in range(SL)
         for blk in (gi_f[t * BS:(t + 1) * BS, :],
                     gi_r[(SL - 1 - t) * BS:(SL - t) * BS, :])],
        axis=0)                                                        # (SL*2BS, 4H)

    whh = wts_ref[E:E + H, :]                                          # (H, 8H)
    row_is_fwd = jax.lax.broadcasted_iota(jnp.int32, (2 * BS, G4), 0) < BS

    # ---- 4. fused bidirectional recurrence: one MXU push per timestep ------
    h = jnp.zeros((2 * BS, H), f32)          # rows 0:BS fwd, BS:2BS rev
    c = jnp.zeros((2 * BS, H), f32)
    hf_steps, hr_steps = [], []
    for t in range(SL):
        raw = jnp.dot(h, whh, preferred_element_type=f32)              # (2BS, 8H)
        gates = (jnp.where(row_is_fwd, raw[:, 0:G4], raw[:, G4:2 * G4])
                 + gi_comb[t * 2 * BS:(t + 1) * 2 * BS, :])            # (2BS, 4H)
        sig = jax.nn.sigmoid(gates)     # one EUP pass: i, f, o (both directions)
        th = jnp.tanh(gates)            # one EUP pass: g        (both directions)
        c = sig[:, H:2 * H] * c + sig[:, 0:H] * th[:, 2 * H:3 * H]
        h = sig[:, 3 * H:4 * H] * jnp.tanh(c)
        hf_steps.append(h[0:BS, :])                 # time t
        hr_steps.append(h[BS:2 * BS, :])            # time SL-1-t
    hf_all = jnp.concatenate(hf_steps, axis=0)                         # (SLBS, H)
    hr_all = jnp.concatenate(hr_steps[::-1], axis=0)                   # (SLBS, H)

    # ---- 5. tag head + stabilized log_softmax (lane-dense padded output) ---
    h_cat = jnp.concatenate([hf_all, hr_all], axis=1)                  # (SLBS, 2H)
    tag = (jnp.dot(h_cat, wts_ref[E + H:E + 3 * H, 0:TAGPAD],
                   preferred_element_type=f32)
           + biases_ref[2:3, 0:TAGPAD])                                # (SLBS, TAGPAD)
    m = jnp.max(tag, axis=-1, keepdims=True)        # pad lanes hold -1e30 bias
    lse = m + jnp.log(jnp.sum(jnp.exp(tag - m), axis=-1, keepdims=True))
    out_ref[...] = tag - lse


# ------------------------------ parameters ----------------------------------
def init_params(key, vocab_size, word_dim, char_dim, kernel_size, hidden_dim,
                tagset_size, alphabet_size=ALPHABET_SIZE):
    ks = jax.random.split(key, 12)
    s = 0.1
    E = word_dim + char_dim
    H = hidden_dim
    G8 = 8 * H
    cmax = max(word_dim, char_dim)
    vocab_p, alpha_p = _ru8(vocab_size), _ru8(alphabet_size)
    assert tagset_size <= TAGPAD <= G8

    word_emb = jax.random.normal(ks[0], (vocab_size, word_dim), jnp.float32) * s
    char_emb = jax.random.normal(ks[1], (alphabet_size, char_dim), jnp.float32) * s
    conv_w = jax.random.normal(ks[2], (char_dim, char_dim, kernel_size),
                               jnp.float32) * s          # PyTorch Conv1d (out, in, K)
    conv_b = jax.random.normal(ks[3], (char_dim,), jnp.float32) * s
    wih_f = jax.random.normal(ks[4], (E, 4 * H), jnp.float32) * s
    whh_f = jax.random.normal(ks[5], (H, 4 * H), jnp.float32) * s
    b_f = jax.random.normal(ks[6], (4 * H,), jnp.float32) * s          # b_ih + b_hh
    wih_r = jax.random.normal(ks[7], (E, 4 * H), jnp.float32) * s
    whh_r = jax.random.normal(ks[8], (H, 4 * H), jnp.float32) * s
    b_r = jax.random.normal(ks[9], (4 * H,), jnp.float32) * s          # b_ih + b_hh
    wout = jax.random.normal(ks[10], (2 * H, tagset_size), jnp.float32) * s  # W.T
    bout = jax.random.normal(ks[11], (tagset_size,), jnp.float32) * s

    def pad_rc(a, rows, cols):
        return jnp.pad(a, ((0, rows - a.shape[0]), (0, cols - a.shape[1])))

    # bf16 gather/conv table: [word_emb ; char_emb ; conv taps (K, in, out)]
    conv_w_t = jnp.transpose(conv_w, (2, 1, 0)).reshape(kernel_size * char_dim,
                                                        char_dim)
    tabs = jnp.concatenate([pad_rc(word_emb, vocab_p, cmax),
                            pad_rc(char_emb, alpha_p, cmax),
                            pad_rc(conv_w_t, kernel_size * char_dim, cmax)],
                           axis=0).astype(jnp.bfloat16)

    # f32 matmul weights: rows [wih_f|wih_r ; whh_f|whh_r ; wout (0-padded)]
    wih_full = jnp.concatenate([wih_f, wih_r], axis=1)                 # (E, 8H)
    whh_cat = jnp.concatenate([whh_f, whh_r], axis=1)                  # (H, 8H)
    wout_pad = pad_rc(wout, 2 * H, G8)                                 # (2H, 8H)
    wts = jnp.concatenate([wih_full, whh_cat, wout_pad], axis=0)       # (E+3H, 8H)

    # biases: row0 conv_b, row1 [b_f|b_r], row2 bout (-1e30 on padded tag lanes)
    row0 = jnp.pad(conv_b, (0, G8 - char_dim))
    row1 = jnp.concatenate([b_f, b_r])
    row2 = jnp.concatenate([bout,
                            jnp.full((TAGPAD - tagset_size,), -1e30, jnp.float32),
                            jnp.zeros((G8 - TAGPAD,), jnp.float32)])
    biases = jnp.stack([row0, row1, row2], axis=0)                     # (3, 8H)

    return dict(tabs=tabs, wts=wts, biases=biases)


# ------------------------------- forward ------------------------------------
@functools.partial(jax.jit,
                   static_argnames=("vocab", "alpha", "wd", "cd", "k", "h", "tag"))
def pos_tagger_forward(encoding, tabs, wts, biases, *,
                       vocab, alpha, wd, cd, k, h, tag):
    # encoding: (bs, sl, 1 + wl) int32; [:, :, 0] word idx, [:, :, 1:] char idx
    bs, sl, wlp1 = encoding.shape
    wl = wlp1 - 1
    slbs = sl * bs
    vocab_p, alpha_p = _ru8(vocab), _ru8(alpha)

    word_idx = encoding[:, :, 0]
    char_idx = encoding[:, :, 1:]
    # time-major word ids (row = s*bs + b); char-position-major char ids
    # (row = p*slbs + s*bs + b), pre-offset by vocab_p into the packed table.
    word_tm = jnp.transpose(word_idx, (1, 0)).reshape(slbs, 1)
    char_pm = jnp.transpose(char_idx, (2, 1, 0)).reshape(wl * slbs, 1) + vocab_p
    idx_all = jnp.concatenate([word_tm, char_pm], axis=0).astype(jnp.int32)

    kern = functools.partial(pos_tagger_kernel, BS=bs, SL=sl, WL=wl, WD=wd, CD=cd,
                             K=k, H=h, VOCAB_P=vocab_p, ALPHA_P=alpha_p)
    out_flat = pl.pallas_call(
        kern,
        out_shape=jax.ShapeDtypeStruct((slbs, TAGPAD), jnp.float32),
        in_specs=[pl.BlockSpec(memory_space=pltpu.MemorySpace.VMEM)] * 4,
        out_specs=pl.BlockSpec(memory_space=pltpu.MemorySpace.VMEM),
    )(idx_all, tabs, wts, biases)

    # (sl*bs, TAGPAD) time-major lane-dense slab -> (bs, sl, tag)
    out = out_flat[:, :tag].reshape(sl, bs, tag)
    return jnp.transpose(out, (1, 0, 2))


if __name__ == "__main__":
    WORD_DIM, CHAR_DIM, KSIZE, HIDDEN = 16, 16, 3, 32
    VOCAB, TAGSET = 50, 10
    BS, SL, WL = 2, 8, 12

    key = jax.random.PRNGKey(0)
    pkey, wkey, ckey = jax.random.split(key, 3)
    params = init_params(pkey, VOCAB, WORD_DIM, CHAR_DIM, KSIZE, HIDDEN, TAGSET)

    word_ids = jax.random.randint(wkey, (BS, SL, 1), 0, VOCAB, dtype=jnp.int32)
    char_ids = jax.random.randint(ckey, (BS, SL, WL), 0, ALPHABET_SIZE,
                                  dtype=jnp.int32)
    encoding = jnp.concatenate([word_ids, char_ids], axis=2)          # (2, 8, 13)

    out = pos_tagger_forward(encoding, params["tabs"], params["wts"],
                             params["biases"],
                             vocab=VOCAB, alpha=ALPHABET_SIZE, wd=WORD_DIM,
                             cd=CHAR_DIM, k=KSIZE, h=HIDDEN, tag=TAGSET)
    jax.block_until_ready(out)
    assert out.shape == (BS, SL, TAGSET)
    assert bool(jnp.all(jnp.isfinite(out)))
    # log_softmax rows should (approximately) sum to 1 in prob space
    assert bool(jnp.all(jnp.abs(jnp.sum(jnp.exp(out), axis=-1) - 1.0) < 1e-4))
    print("KERNEL_OK")
</pallas_src>

<mosaic_0001>
module attributes {stable_mosaic.version = 11 : i64} {
  func.func @pos_tagger_kernel(%arg0: memref<208x1xi32, #tpu.memory_space<vmem>>, %arg1: memref<360x16xbf16, #tpu.memory_space<vmem>>, %arg2: memref<128x256xf32, #tpu.memory_space<vmem>>, %arg3: memref<3x256xf32, #tpu.memory_space<vmem>>, %arg4: memref<16x128xf32, #tpu.memory_space<vmem>>) attributes {dimension_semantics = [], scalar_prefetch = 0 : i64, scratch_operands = 0 : i64, tpu.core_type = #tpu.core_type<tc>} {
    %c0 = arith.constant 0 : index
    %c0_0 = arith.constant 0 : index
    %0 = vector.load %arg0[%c0, %c0_0] : memref<208x1xi32, #tpu.memory_space<vmem>>, vector<208x1xi32>
    %1 = tpu.iota {dimensions = array<i32: 1>} : vector<208x360xi32>
    %2 = vector.broadcast %0 : vector<208x1xi32> to vector<208x360xi32>
    %3 = arith.cmpi eq, %1, %2 : vector<208x360xi32>
    %4 = arith.extui %3 : vector<208x360xi1> to vector<208x360xi32>
    %5 = arith.sitofp %4 : vector<208x360xi32> to vector<208x360xf32>
    %6 = arith.truncf %5 : vector<208x360xf32> to vector<208x360xbf16>
    %c0_1 = arith.constant 0 : index
    %c0_2 = arith.constant 0 : index
    %7 = vector.load %arg1[%c0_1, %c0_2] : memref<360x16xbf16, #tpu.memory_space<vmem>>, vector<360x16xbf16>
    %cst = arith.constant dense<0.000000e+00> : vector<208x16xf32>
    %8 = tpu.matmul %6, %7, %cst {dimension_numbers = #tpu.dot_dimension_numbers<[1], [0], [0], [1], [0, 0, 1, 1], [], []>} : vector<208x360xbf16>, vector<360x16xbf16>, vector<208x16xf32> -> vector<208x16xf32>
    %9 = vector.extract_strided_slice %8 {offsets = [0, 0], sizes = [16, 16], strides = [1, 1]} : vector<208x16xf32> to vector<16x16xf32>
    %10 = vector.extract_strided_slice %8 {offsets = [16, 0], sizes = [192, 16], strides = [1, 1]} : vector<208x16xf32> to vector<192x16xf32>
    %11 = arith.truncf %10 : vector<192x16xf32> to vector<192x16xbf16>
    %12 = vector.extract_strided_slice %11 {offsets = [0, 0], sizes = [160, 16], strides = [1, 1]} : vector<192x16xbf16> to vector<160x16xbf16>
    %13 = vector.extract_strided_slice %11 {offsets = [16, 0], sizes = [160, 16], strides = [1, 1]} : vector<192x16xbf16> to vector<160x16xbf16>
    %14 = vector.extract_strided_slice %11 {offsets = [32, 0], sizes = [160, 16], strides = [1, 1]} : vector<192x16xbf16> to vector<160x16xbf16>
    %15 = tpu.concatenate %12, %13, %14 in 1 : vector<160x16xbf16>, vector<160x16xbf16>, vector<160x16xbf16> -> vector<160x48xbf16>
    %c312 = arith.constant 312 : index
    %c0_3 = arith.constant 0 : index
    %16 = vector.load %arg1[%c312, %c0_3] : memref<360x16xbf16, #tpu.memory_space<vmem>>, vector<48x16xbf16>
    %cst_4 = arith.constant dense<0.000000e+00> : vector<160x16xf32>
    %17 = tpu.matmul %15, %16, %cst_4 {dimension_numbers = #tpu.dot_dimension_numbers<[1], [0], [0], [1], [0, 0, 1, 1], [], []>} : vector<160x48xbf16>, vector<48x16xbf16>, vector<160x16xf32> -> vector<160x16xf32>
    %c0_5 = arith.constant 0 : index
    %c0_6 = arith.constant 0 : index
    %18 = vector.load %arg3[%c0_5, %c0_6] : memref<3x256xf32, #tpu.memory_space<vmem>>, vector<1x16xf32>
    %19 = vector.broadcast %18 : vector<1x16xf32> to vector<160x16xf32>
    %20 = arith.addf %17, %19 : vector<160x16xf32>
    %cst_7 = arith.constant 0.000000e+00 : f32
    %21 = vector.broadcast %cst_7 : f32 to vector<160x16xf32>
    %22 = arith.maximumf %20, %21 : vector<160x16xf32>
    %23 = vector.extract_strided_slice %22 {offsets = [0, 0], sizes = [16, 16], strides = [1, 1]} : vector<160x16xf32> to vector<16x16xf32>
    %24 = vector.extract_strided_slice %22 {offsets = [16, 0], sizes = [16, 16], strides = [1, 1]} : vector<160x16xf32> to vector<16x16xf32>
    %25 = arith.maximumf %23, %24 : vector<16x16xf32>
    %26 = vector.extract_strided_slice %22 {offsets = [32, 0], sizes = [16, 16], strides = [1, 1]} : vector<160x16xf32> to vector<16x16xf32>
    %27 = arith.maximumf %25, %26 : vector<16x16xf32>
    %28 = vector.extract_strided_slice %22 {offsets = [48, 0], sizes = [16, 16], strides = [1, 1]} : vector<160x16xf32> to vector<16x16xf32>
    %29 = arith.maximumf %27, %28 : vector<16x16xf32>
    %30 = vector.extract_strided_slice %22 {offsets = [64, 0], sizes = [16, 16], strides = [1, 1]} : vector<160x16xf32> to vector<16x16xf32>
    %31 = arith.maximumf %29, %30 : vector<16x16xf32>
    %32 = vector.extract_strided_slice %22 {offsets = [80, 0], sizes = [16, 16], strides = [1, 1]} : vector<160x16xf32> to vector<16x16xf32>
    %33 = arith.maximumf %31, %32 : vector<16x16xf32>
    %34 = vector.extract_strided_slice %22 {offsets = [96, 0], sizes = [16, 16], strides = [1, 1]} : vector<160x16xf32> to vector<16x16xf32>
    %35 = arith.maximumf %33, %34 : vector<16x16xf32>
    %36 = vector.extract_strided_slice %22 {offsets = [112, 0], sizes = [16, 16], strides = [1, 1]} : vector<160x16xf32> to vector<16x16xf32>
    %37 = arith.maximumf %35, %36 : vector<16x16xf32>
    %38 = vector.extract_strided_slice %22 {offsets = [128, 0], sizes = [16, 16], strides = [1, 1]} : vector<160x16xf32> to vector<16x16xf32>
    %39 = arith.maximumf %37, %38 : vector<16x16xf32>
    %40 = vector.extract_strided_slice %22 {offsets = [144, 0], sizes = [16, 16], strides = [1, 1]} : vector<160x16xf32> to vector<16x16xf32>
    %41 = arith.maximumf %39, %40 : vector<16x16xf32>
    %42 = tpu.concatenate %9, %41 in 1 : vector<16x16xf32>, vector<16x16xf32> -> vector<16x32xf32>
    %c0_8 = arith.constant 0 : index
    %c0_9 = arith.constant 0 : index
    %43 = vector.load %arg2[%c0_8, %c0_9] : memref<128x256xf32, #tpu.memory_space<vmem>>, vector<32x256xf32>
    %cst_10 = arith.constant dense<0.000000e+00> : vector<16x256xf32>
    %44 = tpu.matmul %42, %43, %cst_10 {dimension_numbers = #tpu.dot_dimension_numbers<[1], [0], [0], [1], [0, 0, 1, 1], [], []>} : vector<16x32xf32>, vector<32x256xf32>, vector<16x256xf32> -> vector<16x256xf32>
    %c1 = arith.constant 1 : index
    %c0_11 = arith.constant 0 : index
    %45 = vector.load %arg3[%c1, %c0_11] : memref<3x256xf32, #tpu.memory_space<vmem>>, vector<1x256xf32>
    %46 = vector.broadcast %45 : vector<1x256xf32> to vector<16x256xf32>
    %47 = arith.addf %44, %46 : vector<16x256xf32>
    %48 = vector.extract_strided_slice %47 {offsets = [0, 0], sizes = [16, 128], strides = [1, 1]} : vector<16x256xf32> to vector<16x128xf32>
    %49 = vector.extract_strided_slice %47 {offsets = [0, 128], sizes = [16, 128], strides = [1, 1]} : vector<16x256xf32> to vector<16x128xf32>
    %50 = vector.extract_strided_slice %48 {offsets = [0, 0], sizes = [2, 128], strides = [1, 1]} : vector<16x128xf32> to vector<2x128xf32>
    %51 = vector.extract_strided_slice %49 {offsets = [14, 0], sizes = [2, 128], strides = [1, 1]} : vector<16x128xf32> to vector<2x128xf32>
    %52 = vector.extract_strided_slice %48 {offsets = [2, 0], sizes = [2, 128], strides = [1, 1]} : vector<16x128xf32> to vector<2x128xf32>
    %53 = vector.extract_strided_slice %49 {offsets = [12, 0], sizes = [2, 128], strides = [1, 1]} : vector<16x128xf32> to vector<2x128xf32>
    %54 = vector.extract_strided_slice %48 {offsets = [4, 0], sizes = [2, 128], strides = [1, 1]} : vector<16x128xf32> to vector<2x128xf32>
    %55 = vector.extract_strided_slice %49 {offsets = [10, 0], sizes = [2, 128], strides = [1, 1]} : vector<16x128xf32> to vector<2x128xf32>
    %56 = vector.extract_strided_slice %48 {offsets = [6, 0], sizes = [2, 128], strides = [1, 1]} : vector<16x128xf32> to vector<2x128xf32>
    %57 = vector.extract_strided_slice %49 {offsets = [8, 0], sizes = [2, 128], strides = [1, 1]} : vector<16x128xf32> to vector<2x128xf32>
    %58 = vector.extract_strided_slice %48 {offsets = [8, 0], sizes = [2, 128], strides = [1, 1]} : vector<16x128xf32> to vector<2x128xf32>
    %59 = vector.extract_strided_slice %49 {offsets = [6, 0], sizes = [2, 128], strides = [1, 1]} : vector<16x128xf32> to vector<2x128xf32>
    %60 = vector.extract_strided_slice %48 {offsets = [10, 0], sizes = [2, 128], strides = [1, 1]} : vector<16x128xf32> to vector<2x128xf32>
    %61 = vector.extract_strided_slice %49 {offsets = [4, 0], sizes = [2, 128], strides = [1, 1]} : vector<16x128xf32> to vector<2x128xf32>
    %62 = vector.extract_strided_slice %48 {offsets = [12, 0], sizes = [2, 128], strides = [1, 1]} : vector<16x128xf32> to vector<2x128xf32>
    %63 = vector.extract_strided_slice %49 {offsets = [2, 0], sizes = [2, 128], strides = [1, 1]} : vector<16x128xf32> to vector<2x128xf32>
    %64 = vector.extract_strided_slice %48 {offsets = [14, 0], sizes = [2, 128], strides = [1, 1]} : vector<16x128xf32> to vector<2x128xf32>
    %65 = vector.extract_strided_slice %49 {offsets = [0, 0], sizes = [2, 128], strides = [1, 1]} : vector<16x128xf32> to vector<2x128xf32>
    %66 = tpu.concatenate %50, %51, %52, %53, %54, %55, %56, %57, %58, %59, %60, %61, %62, %63, %64, %65 in 0 : vector<2x128xf32>, vector<2x128xf32>, vector<2x128xf32>, vector<2x128xf32>, vector<2x128xf32>, vector<2x128xf32>, vector<2x128xf32>, vector<2x128xf32>, vector<2x128xf32>, vector<2x128xf32>, vector<2x128xf32>, vector<2x128xf32>, vector<2x128xf32>, vector<2x128xf32>, vector<2x128xf32>, vector<2x128xf32> -> vector<32x128xf32>
    %c32 = arith.constant 32 : index
    %c0_12 = arith.constant 0 : index
    %67 = vector.load %arg2[%c32, %c0_12] : memref<128x256xf32, #tpu.memory_space<vmem>>, vector<32x256xf32>
    %68 = tpu.iota {dimensions = array<i32: 0>} : vector<4x128xi32>
    %c2_i32 = arith.constant 2 : i32
    %69 = vector.broadcast %c2_i32 : i32 to vector<4x128xi32>
    %70 = arith.cmpi slt, %68, %69 : vector<4x128xi32>
    %cst_13 = arith.constant 0.000000e+00 : f32
    %71 = vector.broadcast %cst_13 : f32 to vector<4x32xf32>
    %cst_14 = arith.constant 0.000000e+00 : f32
    %72 = vector.broadcast %cst_14 : f32 to vector<4x32xf32>
    %cst_15 = arith.constant dense<0.000000e+00> : vector<4x256xf32>
    %73 = tpu.matmul %71, %67, %cst_15 {dimension_numbers = #tpu.dot_dimension_numbers<[1], [0], [0], [1], [0, 0, 1, 1], [], []>} : vector<4x32xf32>, vector<32x256xf32>, vector<4x256xf32> -> vector<4x256xf32>
    %74 = vector.extract_strided_slice %73 {offsets = [0, 0], sizes = [4, 128], strides = [1, 1]} : vector<4x256xf32> to vector<4x128xf32>
    %75 = vector.extract_strided_slice %73 {offsets = [0, 128], sizes = [4, 128], strides = [1, 1]} : vector<4x256xf32> to vector<4x128xf32>
    %76 = arith.select %70, %74, %75 : vector<4x128xi1>, vector<4x128xf32>
    %77 = vector.extract_strided_slice %66 {offsets = [0, 0], sizes = [4, 128], strides = [1, 1]} : vector<32x128xf32> to vector<4x128xf32>
    %78 = arith.addf %76, %77 : vector<4x128xf32>
    %79 = arith.negf %78 : vector<4x128xf32>
    %80 = math.exp %79 : vector<4x128xf32>
    %cst_16 = arith.constant 1.000000e+00 : f32
    %81 = vector.broadcast %cst_16 : f32 to vector<4x128xf32>
    %82 = arith.addf %81, %80 : vector<4x128xf32>
    %83 = arith.divf %81, %82 : vector<4x128xf32>
    %84 = math.tanh %78 : vector<4x128xf32>
    %85 = vector.extract_strided_slice %83 {offsets = [0, 32], sizes = [4, 32], strides = [1, 1]} : vector<4x128xf32> to vector<4x32xf32>
    %86 = arith.mulf %85, %72 : vector<4x32xf32>
    %87 = vector.extract_strided_slice %83 {offsets = [0, 0], sizes = [4, 32], strides = [1, 1]} : vector<4x128xf32> to vector<4x32xf32>
    %88 = vector.extract_strided_slice %84 {offsets = [0, 64], sizes = [4, 32], strides = [1, 1]} : vector<4x128xf32> to vector<4x32xf32>
    %89 = arith.mulf %87, %88 : vector<4x32xf32>
    %90 = arith.addf %86, %89 : vector<4x32xf32>
    %91 = vector.extract_strided_slice %83 {offsets = [0, 96], sizes = [4, 32], strides = [1, 1]} : vector<4x128xf32> to vector<4x32xf32>
    %92 = math.tanh %90 : vector<4x32xf32>
    %93 = arith.mulf %91, %92 : vector<4x32xf32>
    %94 = vector.extract_strided_slice %93 {offsets = [0, 0], sizes = [2, 32], strides = [1, 1]} : vector<4x32xf32> to vector<2x32xf32>
    %95 = vector.extract_strided_slice %93 {offsets = [2, 0], sizes = [2, 32], strides = [1, 1]} : vector<4x32xf32> to vector<2x32xf32>
    %cst_17 = arith.constant dense<0.000000e+00> : vector<4x256xf32>
    %96 = tpu.matmul %93, %67, %cst_17 {dimension_numbers = #tpu.dot_dimension_numbers<[1], [0], [0], [1], [0, 0, 1, 1], [], []>} : vector<4x32xf32>, vector<32x256xf32>, vector<4x256xf32> -> vector<4x256xf32>
    %97 = vector.extract_strided_slice %96 {offsets = [0, 0], sizes = [4, 128], strides = [1, 1]} : vector<4x256xf32> to vector<4x128xf32>
    %98 = vector.extract_strided_slice %96 {offsets = [0, 128], sizes = [4, 128], strides = [1, 1]} : vector<4x256xf32> to vector<4x128xf32>
    %99 = arith.select %70, %97, %98 : vector<4x128xi1>, vector<4x128xf32>
    %100 = vector.extract_strided_slice %66 {offsets = [4, 0], sizes = [4, 128], strides = [1, 1]} : vector<32x128xf32> to vector<4x128xf32>
    %101 = arith.addf %99, %100 : vector<4x128xf32>
    %102 = arith.negf %101 : vector<4x128xf32>
    %103 = math.exp %102 : vector<4x128xf32>
    %cst_18 = arith.constant 1.000000e+00 : f32
    %104 = vector.broadcast %cst_18 : f32 to vector<4x128xf32>
    %105 = arith.addf %104, %103 : vector<4x128xf32>
    %106 = arith.divf %104, %105 : vector<4x128xf32>
    %107 = math.tanh %101 : vector<4x128xf32>
    %108 = vector.extract_strided_slice %106 {offsets = [0, 32], sizes = [4, 32], strides = [1, 1]} : vector<4x128xf32> to vector<4x32xf32>
    %109 = arith.mulf %108, %90 : vector<4x32xf32>
    %110 = vector.extract_strided_slice %106 {offsets = [0, 0], sizes = [4, 32], strides = [1, 1]} : vector<4x128xf32> to vector<4x32xf32>
    %111 = vector.extract_strided_slice %107 {offsets = [0, 64], sizes = [4, 32], strides = [1, 1]} : vector<4x128xf32> to vector<4x32xf32>
    %112 = arith.mulf %110, %111 : vector<4x32xf32>
    %113 = arith.addf %109, %112 : vector<4x32xf32>
    %114 = vector.extract_strided_slice %106 {offsets = [0, 96], sizes = [4, 32], strides = [1, 1]} : vector<4x128xf32> to vector<4x32xf32>
    %115 = math.tanh %113 : vector<4x32xf32>
    %116 = arith.mulf %114, %115 : vector<4x32xf32>
    %117 = vector.extract_strided_slice %116 {offsets = [0, 0], sizes = [2, 32], strides = [1, 1]} : vector<4x32xf32> to vector<2x32xf32>
    %118 = vector.extract_strided_slice %116 {offsets = [2, 0], sizes = [2, 32], strides = [1, 1]} : vector<4x32xf32> to vector<2x32xf32>
    %cst_19 = arith.constant dense<0.000000e+00> : vector<4x256xf32>
    %119 = tpu.matmul %116, %67, %cst_19 {dimension_numbers = #tpu.dot_dimension_numbers<[1], [0], [0], [1], [0, 0, 1, 1], [], []>} : vector<4x32xf32>, vector<32x256xf32>, vector<4x256xf32> -> vector<4x256xf32>
    %120 = vector.extract_strided_slice %119 {offsets = [0, 0], sizes = [4, 128], strides = [1, 1]} : vector<4x256xf32> to vector<4x128xf32>
    %121 = vector.extract_strided_slice %119 {offsets = [0, 128], sizes = [4, 128], strides = [1, 1]} : vector<4x256xf32> to vector<4x128xf32>
    %122 = arith.select %70, %120, %121 : vector<4x128xi1>, vector<4x128xf32>
    %123 = vector.extract_strided_slice %66 {offsets = [8, 0], sizes = [4, 128], strides = [1, 1]} : vector<32x128xf32> to vector<4x128xf32>
    %124 = arith.addf %122, %123 : vector<4x128xf32>
    %125 = arith.negf %124 : vector<4x128xf32>
    %126 = math.exp %125 : vector<4x128xf32>
    %cst_20 = arith.constant 1.000000e+00 : f32
    %127 = vector.broadcast %cst_20 : f32 to vector<4x128xf32>
    %128 = arith.addf %127, %126 : vector<4x128xf32>
    %129 = arith.divf %127, %128 : vector<4x128xf32>
    %130 = math.tanh %124 : vector<4x128xf32>
    %131 = vector.extract_strided_slice %129 {offsets = [0, 32], sizes = [4, 32], strides = [1, 1]} : vector<4x128xf32> to vector<4x32xf32>
    %132 = arith.mulf %131, %113 : vector<4x32xf32>
    %133 = vector.extract_strided_slice %129 {offsets = [0, 0], sizes = [4, 32], strides = [1, 1]} : vector<4x128xf32> to vector<4x32xf32>
    %134 = vector.extract_strided_slice %130 {offsets = [0, 64], sizes = [4, 32], strides = [1, 1]} : vector<4x128xf32> to vector<4x32xf32>
    %135 = arith.mulf %133, %134 : vector<4x32xf32>
    %136 = arith.addf %132, %135 : vector<4x32xf32>
    %137 = vector.extract_strided_slice %129 {offsets = [0, 96], sizes = [4, 32], strides = [1, 1]} : vector<4x128xf32> to vector<4x32xf32>
    %138 = math.tanh %136 : vector<4x32xf32>
    %139 = arith.mulf %137, %138 : vector<4x32xf32>
    %140 = vector.extract_strided_slice %139 {offsets = [0, 0], sizes = [2, 32], strides = [1, 1]} : vector<4x32xf32> to vector<2x32xf32>
    %141 = vector.extract_strided_slice %139 {offsets = [2, 0], sizes = [2, 32], strides = [1, 1]} : vector<4x32xf32> to vector<2x32xf32>
    %cst_21 = arith.constant dense<0.000000e+00> : vector<4x256xf32>
    %142 = tpu.matmul %139, %67, %cst_21 {dimension_numbers = #tpu.dot_dimension_numbers<[1], [0], [0], [1], [0, 0, 1, 1], [], []>} : vector<4x32xf32>, vector<32x256xf32>, vector<4x256xf32> -> vector<4x256xf32>
    %143 = vector.extract_strided_slice %142 {offsets = [0, 0], sizes = [4, 128], strides = [1, 1]} : vector<4x256xf32> to vector<4x128xf32>
    %144 = vector.extract_strided_slice %142 {offsets = [0, 128], sizes = [4, 128], strides = [1, 1]} : vector<4x256xf32> to vector<4x128xf32>
    %145 = arith.select %70, %143, %144 : vector<4x128xi1>, vector<4x128xf32>
    %146 = vector.extract_strided_slice %66 {offsets = [12, 0], sizes = [4, 128], strides = [1, 1]} : vector<32x128xf32> to vector<4x128xf32>
    %147 = arith.addf %145, %146 : vector<4x128xf32>
    %148 = arith.negf %147 : vector<4x128xf32>
    %149 = math.exp %148 : vector<4x128xf32>
    %cst_22 = arith.constant 1.000000e+00 : f32
    %150 = vector.broadcast %cst_22 : f32 to vector<4x128xf32>
    %151 = arith.addf %150, %149 : vector<4x128xf32>
    %152 = arith.divf %150, %151 : vector<4x128xf32>
    %153 = math.tanh %147 : vector<4x128xf32>
    %154 = vector.extract_strided_slice %152 {offsets = [0, 32], sizes = [4, 32], strides = [1, 1]} : vector<4x128xf32> to vector<4x32xf32>
    %155 = arith.mulf %154, %136 : vector<4x32xf32>
    %156 = vector.extract_strided_slice %152 {offsets = [0, 0], sizes = [4, 32], strides = [1, 1]} : vector<4x128xf32> to vector<4x32xf32>
    %157 = vector.extract_strided_slice %153 {offsets = [0, 64], sizes = [4, 32], strides = [1, 1]} : vector<4x128xf32> to vector<4x32xf32>
    %158 = arith.mulf %156, %157 : vector<4x32xf32>
    %159 = arith.addf %155, %158 : vector<4x32xf32>
    %160 = vector.extract_strided_slice %152 {offsets = [0, 96], sizes = [4, 32], strides = [1, 1]} : vector<4x128xf32> to vector<4x32xf32>
    %161 = math.tanh %159 : vector<4x32xf32>
    %162 = arith.mulf %160, %161 : vector<4x32xf32>
    %163 = vector.extract_strided_slice %162 {offsets = [0, 0], sizes = [2, 32], strides = [1, 1]} : vector<4x32xf32> to vector<2x32xf32>
    %164 = vector.extract_strided_slice %162 {offsets = [2, 0], sizes = [2, 32], strides = [1, 1]} : vector<4x32xf32> to vector<2x32xf32>
    %cst_23 = arith.constant dense<0.000000e+00> : vector<4x256xf32>
    %165 = tpu.matmul %162, %67, %cst_23 {dimension_numbers = #tpu.dot_dimension_numbers<[1], [0], [0], [1], [0, 0, 1, 1], [], []>} : vector<4x32xf32>, vector<32x256xf32>, vector<4x256xf32> -> vector<4x256xf32>
    %166 = vector.extract_strided_slice %165 {offsets = [0, 0], sizes = [4, 128], strides = [1, 1]} : vector<4x256xf32> to vector<4x128xf32>
    %167 = vector.extract_strided_slice %165 {offsets = [0, 128], sizes = [4, 128], strides = [1, 1]} : vector<4x256xf32> to vector<4x128xf32>
    %168 = arith.select %70, %166, %167 : vector<4x128xi1>, vector<4x128xf32>
    %169 = vector.extract_strided_slice %66 {offsets = [16, 0], sizes = [4, 128], strides = [1, 1]} : vector<32x128xf32> to vector<4x128xf32>
    %170 = arith.addf %168, %169 : vector<4x128xf32>
    %171 = arith.negf %170 : vector<4x128xf32>
    %172 = math.exp %171 : vector<4x128xf32>
    %cst_24 = arith.constant 1.000000e+00 : f32
    %173 = vector.broadcast %cst_24 : f32 to vector<4x128xf32>
    %174 = arith.addf %173, %172 : vector<4x128xf32>
    %175 = arith.divf %173, %174 : vector<4x128xf32>
    %176 = math.tanh %170 : vector<4x128xf32>
    %177 = vector.extract_strided_slice %175 {offsets = [0, 32], sizes = [4, 32], strides = [1, 1]} : vector<4x128xf32> to vector<4x32xf32>
    %178 = arith.mulf %177, %159 : vector<4x32xf32>
    %179 = vector.extract_strided_slice %175 {offsets = [0, 0], sizes = [4, 32], strides = [1, 1]} : vector<4x128xf32> to vector<4x32xf32>
    %180 = vector.extract_strided_slice %176 {offsets = [0, 64], sizes = [4, 32], strides = [1, 1]} : vector<4x128xf32> to vector<4x32xf32>
    %181 = arith.mulf %179, %180 : vector<4x32xf32>
    %182 = arith.addf %178, %181 : vector<4x32xf32>
    %183 = vector.extract_strided_slice %175 {offsets = [0, 96], sizes = [4, 32], strides = [1, 1]} : vector<4x128xf32> to vector<4x32xf32>
    %184 = math.tanh %182 : vector<4x32xf32>
    %185 = arith.mulf %183, %184 : vector<4x32xf32>
    %186 = vector.extract_strided_slice %185 {offsets = [0, 0], sizes = [2, 32], strides = [1, 1]} : vector<4x32xf32> to vector<2x32xf32>
    %187 = vector.extract_strided_slice %185 {offsets = [2, 0], sizes = [2, 32], strides = [1, 1]} : vector<4x32xf32> to vector<2x32xf32>
    %cst_25 = arith.constant dense<0.000000e+00> : vector<4x256xf32>
    %188 = tpu.matmul %185, %67, %cst_25 {dimension_numbers = #tpu.dot_dimension_numbers<[1], [0], [0], [1], [0, 0, 1, 1], [], []>} : vector<4x32xf32>, vector<32x256xf32>, vector<4x256xf32> -> vector<4x256xf32>
    %189 = vector.extract_strided_slice %188 {offsets = [0, 0], sizes = [4, 128], strides = [1, 1]} : vector<4x256xf32> to vector<4x128xf32>
    %190 = vector.extract_strided_slice %188 {offsets = [0, 128], sizes = [4, 128], strides = [1, 1]} : vector<4x256xf32> to vector<4x128xf32>
    %191 = arith.select %70, %189, %190 : vector<4x128xi1>, vector<4x128xf32>
    %192 = vector.extract_strided_slice %66 {offsets = [20, 0], sizes = [4, 128], strides = [1, 1]} : vector<32x128xf32> to vector<4x128xf32>
    %193 = arith.addf %191, %192 : vector<4x128xf32>
    %194 = arith.negf %193 : vector<4x128xf32>
    %195 = math.exp %194 : vector<4x128xf32>
    %cst_26 = arith.constant 1.000000e+00 : f32
    %196 = vector.broadcast %cst_26 : f32 to vector<4x128xf32>
    %197 = arith.addf %196, %195 : vector<4x128xf32>
    %198 = arith.divf %196, %197 : vector<4x128xf32>
    %199 = math.tanh %193 : vector<4x128xf32>
    %200 = vector.extract_strided_slice %198 {offsets = [0, 32], sizes = [4, 32], strides = [1, 1]} : vector<4x128xf32> to vector<4x32xf32>
    %201 = arith.mulf %200, %182 : vector<4x32xf32>
    %202 = vector.extract_strided_slice %198 {offsets = [0, 0], sizes = [4, 32], strides = [1, 1]} : vector<4x128xf32> to vector<4x32xf32>
    %203 = vector.extract_strided_slice %199 {offsets = [0, 64], sizes = [4, 32], strides = [1, 1]} : vector<4x128xf32> to vector<4x32xf32>
    %204 = arith.mulf %202, %203 : vector<4x32xf32>
    %205 = arith.addf %201, %204 : vector<4x32xf32>
    %206 = vector.extract_strided_slice %198 {offsets = [0, 96], sizes = [4, 32], strides = [1, 1]} : vector<4x128xf32> to vector<4x32xf32>
    %207 = math.tanh %205 : vector<4x32xf32>
    %208 = arith.mulf %206, %207 : vector<4x32xf32>
    %209 = vector.extract_strided_slice %208 {offsets = [0, 0], sizes = [2, 32], strides = [1, 1]} : vector<4x32xf32> to vector<2x32xf32>
    %210 = vector.extract_strided_slice %208 {offsets = [2, 0], sizes = [2, 32], strides = [1, 1]} : vector<4x32xf32> to vector<2x32xf32>
    %cst_27 = arith.constant dense<0.000000e+00> : vector<4x256xf32>
    %211 = tpu.matmul %208, %67, %cst_27 {dimension_numbers = #tpu.dot_dimension_numbers<[1], [0], [0], [1], [0, 0, 1, 1], [], []>} : vector<4x32xf32>, vector<32x256xf32>, vector<4x256xf32> -> vector<4x256xf32>
    %212 = vector.extract_strided_slice %211 {offsets = [0, 0], sizes = [4, 128], strides = [1, 1]} : vector<4x256xf32> to vector<4x128xf32>
    %213 = vector.extract_strided_slice %211 {offsets = [0, 128], sizes = [4, 128], strides = [1, 1]} : vector<4x256xf32> to vector<4x128xf32>
    %214 = arith.select %70, %212, %213 : vector<4x128xi1>, vector<4x128xf32>
    %215 = vector.extract_strided_slice %66 {offsets = [24, 0], sizes = [4, 128], strides = [1, 1]} : vector<32x128xf32> to vector<4x128xf32>
    %216 = arith.addf %214, %215 : vector<4x128xf32>
    %217 = arith.negf %216 : vector<4x128xf32>
    %218 = math.exp %217 : vector<4x128xf32>
    %cst_28 = arith.constant 1.000000e+00 : f32
    %219 = vector.broadcast %cst_28 : f32 to vector<4x128xf32>
    %220 = arith.addf %219, %218 : vector<4x128xf32>
    %221 = arith.divf %219, %220 : vector<4x128xf32>
    %222 = math.tanh %216 : vector<4x128xf32>
    %223 = vector.extract_strided_slice %221 {offsets = [0, 32], sizes = [4, 32], strides = [1, 1]} : vector<4x128xf32> to vector<4x32xf32>
    %224 = arith.mulf %223, %205 : vector<4x32xf32>
    %225 = vector.extract_strided_slice %221 {offsets = [0, 0], sizes = [4, 32], strides = [1, 1]} : vector<4x128xf32> to vector<4x32xf32>
    %226 = vector.extract_strided_slice %222 {offsets = [0, 64], sizes = [4, 32], strides = [1, 1]} : vector<4x128xf32> to vector<4x32xf32>
    %227 = arith.mulf %225, %226 : vector<4x32xf32>
    %228 = arith.addf %224, %227 : vector<4x32xf32>
    %229 = vector.extract_strided_slice %221 {offsets = [0, 96], sizes = [4, 32], strides = [1, 1]} : vector<4x128xf32> to vector<4x32xf32>
    %230 = math.tanh %228 : vector<4x32xf32>
    %231 = arith.mulf %229, %230 : vector<4x32xf32>
    %232 = vector.extract_strided_slice %231 {offsets = [0, 0], sizes = [2, 32], strides = [1, 1]} : vector<4x32xf32> to vector<2x32xf32>
    %233 = vector.extract_strided_slice %231 {offsets = [2, 0], sizes = [2, 32], strides = [1, 1]} : vector<4x32xf32> to vector<2x32xf32>
    %cst_29 = arith.constant dense<0.000000e+00> : vector<4x256xf32>
    %234 = tpu.matmul %231, %67, %cst_29 {dimension_numbers = #tpu.dot_dimension_numbers<[1], [0], [0], [1], [0, 0, 1, 1], [], []>} : vector<4x32xf32>, vector<32x256xf32>, vector<4x256xf32> -> vector<4x256xf32>
    %235 = vector.extract_strided_slice %234 {offsets = [0, 0], sizes = [4, 128], strides = [1, 1]} : vector<4x256xf32> to vector<4x128xf32>
    %236 = vector.extract_strided_slice %234 {offsets = [0, 128], sizes = [4, 128], strides = [1, 1]} : vector<4x256xf32> to vector<4x128xf32>
    %237 = arith.select %70, %235, %236 : vector<4x128xi1>, vector<4x128xf32>
    %238 = vector.extract_strided_slice %66 {offsets = [28, 0], sizes = [4, 128], strides = [1, 1]} : vector<32x128xf32> to vector<4x128xf32>
    %239 = arith.addf %237, %238 : vector<4x128xf32>
    %240 = arith.negf %239 : vector<4x128xf32>
    %241 = math.exp %240 : vector<4x128xf32>
    %cst_30 = arith.constant 1.000000e+00 : f32
    %242 = vector.broadcast %cst_30 : f32 to vector<4x128xf32>
    %243 = arith.addf %242, %241 : vector<4x128xf32>
    %244 = arith.divf %242, %243 : vector<4x128xf32>
    %245 = math.tanh %239 : vector<4x128xf32>
    %246 = vector.extract_strided_slice %244 {offsets = [0, 32], sizes = [4, 32], strides = [1, 1]} : vector<4x128xf32> to vector<4x32xf32>
    %247 = arith.mulf %246, %228 : vector<4x32xf32>
    %248 = vector.extract_strided_slice %244 {offsets = [0, 0], sizes = [4, 32], strides = [1, 1]} : vector<4x128xf32> to vector<4x32xf32>
    %249 = vector.extract_strided_slice %245 {offsets = [0, 64], sizes = [4, 32], strides = [1, 1]} : vector<4x128xf32> to vector<4x32xf32>
    %250 = arith.mulf %248, %249 : vector<4x32xf32>
    %251 = arith.addf %247, %250 : vector<4x32xf32>
    %252 = vector.extract_strided_slice %244 {offsets = [0, 96], sizes = [4, 32], strides = [1, 1]} : vector<4x128xf32> to vector<4x32xf32>
    %253 = math.tanh %251 : vector<4x32xf32>
    %254 = arith.mulf %252, %253 : vector<4x32xf32>
    %255 = vector.extract_strided_slice %254 {offsets = [0, 0], sizes = [2, 32], strides = [1, 1]} : vector<4x32xf32> to vector<2x32xf32>
    %256 = vector.extract_strided_slice %254 {offsets = [2, 0], sizes = [2, 32], strides = [1, 1]} : vector<4x32xf32> to vector<2x32xf32>
    %257 = tpu.concatenate %94, %117, %140, %163, %186, %209, %232, %255 in 0 : vector<2x32xf32>, vector<2x32xf32>, vector<2x32xf32>, vector<2x32xf32>, vector<2x32xf32>, vector<2x32xf32>, vector<2x32xf32>, vector<2x32xf32> -> vector<16x32xf32>
    %258 = tpu.concatenate %256, %233, %210, %187, %164, %141, %118, %95 in 0 : vector<2x32xf32>, vector<2x32xf32>, vector<2x32xf32>, vector<2x32xf32>, vector<2x32xf32>, vector<2x32xf32>, vector<2x32xf32>, vector<2x32xf32> -> vector<16x32xf32>
    %259 = tpu.concatenate %257, %258 in 1 : vector<16x32xf32>, vector<16x32xf32> -> vector<16x64xf32>
    %c64 = arith.constant 64 : index
    %c0_31 = arith.constant 0 : index
    %260 = vector.load %arg2[%c64, %c0_31] : memref<128x256xf32, #tpu.memory_space<vmem>>, vector<64x128xf32>
    %cst_32 = arith.constant dense<0.000000e+00> : vector<16x128xf32>
    %261 = tpu.matmul %259, %260, %cst_32 {dimension_numbers = #tpu.dot_dimension_numbers<[1], [0], [0], [1], [0, 0, 1, 1], [], []>} : vector<16x64xf32>, vector<64x128xf32>, vector<16x128xf32> -> vector<16x128xf32>
    %c2 = arith.constant 2 : index
    %c0_33 = arith.constant 0 : index
    %262 = vector.load %arg3[%c2, %c0_33] : memref<3x256xf32, #tpu.memory_space<vmem>>, vector<1x128xf32>
    %263 = vector.broadcast %262 : vector<1x128xf32> to vector<16x128xf32>
    %264 = arith.addf %261, %263 : vector<16x128xf32>
    %cst_34 = arith.constant dense<0xFF800000> : vector<16xf32>
    %265 = vector.multi_reduction <maximumf>, %264, %cst_34 [1] : vector<16x128xf32> to vector<16xf32>
    %266 = vector.shape_cast %265 : vector<16xf32> to vector<16x1xf32>
    %267 = vector.broadcast %266 : vector<16x1xf32> to vector<16x128xf32>
    %268 = arith.subf %264, %267 : vector<16x128xf32>
    %269 = math.exp %268 : vector<16x128xf32>
    %cst_35 = arith.constant dense<0.000000e+00> : vector<16xf32>
    %270 = vector.multi_reduction <add>, %269, %cst_35 [1] : vector<16x128xf32> to vector<16xf32>
    %271 = vector.shape_cast %270 : vector<16xf32> to vector<16x1xf32>
    %272 = math.log %271 : vector<16x1xf32>
    %273 = arith.addf %266, %272 : vector<16x1xf32>
    %274 = vector.broadcast %273 : vector<16x1xf32> to vector<16x128xf32>
    %275 = arith.subf %264, %274 : vector<16x128xf32>
    %c0_36 = arith.constant 0 : index
    %c0_37 = arith.constant 0 : index
    %276 = vector.load %arg4[%c0_36, %c0_37] : memref<16x128xf32, #tpu.memory_space<vmem>>, vector<16x128xf32>
    tpu.vector_store %arg4[%c0_36, %c0_37], %275 {strides = array<i32>} : memref<16x128xf32, #tpu.memory_space<vmem>>, vector<16x128xf32>,
    return
  }
}

</mosaic_0001>

<llo_original>
// kernel: pos_tagger_forward.1
$region0: #{pos_tagger_forward.1}
  #allocation0 [shape = 'u32[]', space=smem, size = 0x4, offset = 0x4, fixed_abs, tag = 'smem constant byte address 0x4 - core index']
  #allocation1 [shape = 'u32[144,128]{1,0:T(1,128)}', space=vmem, size = 0x12000, scoped, tag = 'internal scratch']
  %s0 = inlined_call_operand.vmem [shape: s32[208,1], index: 0, kind: input, shape index: {}]
  %s1 = inlined_call_operand.vmem [shape: bf16[360,16], index: 1, kind: input, shape index: {}]
  %s2 = inlined_call_operand.vmem [shape: f32[128,256], index: 2, kind: input, shape index: {}]
  %s3 = inlined_call_operand.vmem [shape: f32[3,256], index: 3, kind: input, shape index: {}]
  %s4 = inlined_call_operand.vmem [shape: f32[16,128], index: 4, kind: output, shape index: {}]
  %s5 = sld [smem:[#allocation0]]
  $region26: #{pos_tagger_forward.1} parent=0
    _
  %s7 = ssub.s32 1, %s5
  %s8 = scalar_select 0, %s7, %s5
  // Predicated region
  $region2: #{pos_tagger_forward.1} parent=0 // pred_check
    _
  $region3: #{pos_tagger_forward.1} parent=0 // pred_check_branch
    %10 = sbr.rel (0) target = $region5
  $region4: #{pos_tagger_forward.1} parent=0 // pred_region
    _
  $region5: #{pos_tagger_forward.1} parent=0 // pred_fallthru
    _
  // Predicated region
  $region6: #{pos_tagger_forward.1} parent=0 // pred_check
    _
  $region7: #{pos_tagger_forward.1} parent=0 // pred_check_branch
    %12 = sbr.rel (0) target = $region9
  $region8: #{pos_tagger_forward.1} parent=0 // pred_region
    _
  $region9: #{pos_tagger_forward.1} parent=0 // pred_fallthru
    _
  // Predicated region
  $region10: #{pos_tagger_forward.1} parent=0 // pred_check
    _
  $region11: #{pos_tagger_forward.1} parent=0 // pred_check_branch
    %14 = sbr.rel (0) target = $region13
  $region12: #{pos_tagger_forward.1} parent=0 // pred_region
    _
  $region13: #{pos_tagger_forward.1} parent=0 // pred_fallthru
    _
  // Predicated region
  $region14: #{pos_tagger_forward.1} parent=0 // pred_check
    _
  $region15: #{pos_tagger_forward.1} parent=0 // pred_check_branch
    %16 = sbr.rel (0) target = $region17
  $region16: #{pos_tagger_forward.1} parent=0 // pred_region
    _
  $region17: #{pos_tagger_forward.1} parent=0 // pred_fallthru
    _
  %v18 = vld [vmem:[%s0] sm:$0xff]
  %v19 = vld [vmem:[%s0 + $0x8] sm:$0xff]
  %v20 = vld [vmem:[%s0 + $0x10] sm:$0xff]
  %v21 = vld [vmem:[%s0 + $0x18] sm:$0xff]
  %v22 = vld [vmem:[%s0 + $0x20] sm:$0xff]
  %v23 = vld [vmem:[%s0 + $0x28] sm:$0xff]
  %v24 = vld [vmem:[%s0 + $0x30] sm:$0xff]
  %v25 = vld [vmem:[%s0 + $0x38] sm:$0xff]
  %v26 = vld [vmem:[%s0 + $0x40] sm:$0xff]
  %v27 = vld [vmem:[%s0 + $0x48] sm:$0xff]
  %v28 = vld [vmem:[%s0 + $0x50] sm:$0xff]
  %v29 = vld [vmem:[%s0 + $0x58] sm:$0xff]
  %v30 = vld [vmem:[%s0 + $0x60] sm:$0xff]
  %v31 = vld [vmem:[%s0 + $0x68] sm:$0xff]
  %v32 = vld [vmem:[%s0 + $0x70] sm:$0xff]
  %v33 = vld [vmem:[%s0 + $0x78] sm:$0xff]
  %v34 = vld [vmem:[%s0 + $0x80] sm:$0xff]
  %v35 = vld [vmem:[%s0 + $0x88] sm:$0xff]
  %v36 = vld [vmem:[%s0 + $0x90] sm:$0xff]
  %v37 = vld [vmem:[%s0 + $0x98] sm:$0xff]
  %v38 = vld [vmem:[%s0 + $0xa0] sm:$0xff]
  %v39 = vld [vmem:[%s0 + $0xa8] sm:$0xff]
  %v40 = vld [vmem:[%s0 + $0xb0] sm:$0xff]
  %v41 = vld [vmem:[%s0 + $0xb8] sm:$0xff]
  %v42 = vld [vmem:[%s0 + $0xc0] sm:$0xff]
  %v43 = vld [vmem:[%s0 + $0xc8] sm:$0xff]
  %v44 = vlaneseq
  %v45 = vand.u32 %v44, 127
  %v46 = vadd.s32 %v45, 128
  %v47 = vadd.s32 %v45, 256
  %48 = vset.pattern.permute.xlu0 0
  %49 = vperm.xlu0 %48, %v18
  %v50 = vpop.permute.xlu0 %49
  %51 = vset.pattern.permute.xlu0 0
  %52 = vperm.xlu0 %51, %v19
  %v53 = vpop.permute.xlu0 %52
  %54 = vset.pattern.permute.xlu0 0
  %55 = vperm.xlu0 %54, %v20
  %v56 = vpop.permute.xlu0 %55
  %57 = vset.pattern.permute.xlu0 0
  %58 = vperm.xlu0 %57, %v21
  %v59 = vpop.permute.xlu0 %58
  %60 = vset.pattern.permute.xlu0 0
  %61 = vperm.xlu0 %60, %v22
  %v62 = vpop.permute.xlu0 %61
  %63 = vset.pattern.permute.xlu0 0
  %64 = vperm.xlu0 %63, %v23
  %v65 = vpop.permute.xlu0 %64
  %66 = vset.pattern.permute.xlu0 0
  %67 = vperm.xlu0 %66, %v24
  %v68 = vpop.permute.xlu0 %67
  %69 = vset.pattern.permute.xlu0 0
  %70 = vperm.xlu0 %69, %v25
  %v71 = vpop.permute.xlu0 %70
  %72 = vset.pattern.permute.xlu0 0
  %73 = vperm.xlu0 %72, %v26
  %v74 = vpop.permute.xlu0 %73
  %75 = vset.pattern.permute.xlu0 0
  %76 = vperm.xlu0 %75, %v27
  %v77 = vpop.permute.xlu0 %76
  %78 = vset.pattern.permute.xlu0 0
  %79 = vperm.xlu0 %78, %v28
  %v80 = vpop.permute.xlu0 %79
  %81 = vset.pattern.permute.xlu0 0
  %82 = vperm.xlu0 %81, %v29
  %v83 = vpop.permute.xlu0 %82
  %84 = vset.pattern.permute.xlu0 0
  %85 = vperm.xlu0 %84, %v30
  %v86 = vpop.permute.xlu0 %85
  %87 = vset.pattern.permute.xlu0 0
  %88 = vperm.xlu0 %87, %v31
  %v89 = vpop.permute.xlu0 %88
  %90 = vset.pattern.permute.xlu0 0
  %91 = vperm.xlu0 %90, %v32
  %v92 = vpop.permute.xlu0 %91
  %93 = vset.pattern.permute.xlu0 0
  %94 = vperm.xlu0 %93, %v33
  %v95 = vpop.permute.xlu0 %94
  %96 = vset.pattern.permute.xlu0 0
  %97 = vperm.xlu0 %96, %v34
  %v98 = vpop.permute.xlu0 %97
  %99 = vset.pattern.permute.xlu0 0
  %100 = vperm.xlu0 %99, %v35
  %v101 = vpop.permute.xlu0 %100
  %102 = vset.pattern.permute.xlu0 0
  %103 = vperm.xlu0 %102, %v36
  %v104 = vpop.permute.xlu0 %103
  %105 = vset.pattern.permute.xlu0 0
  %106 = vperm.xlu0 %105, %v37
  %v107 = vpop.permute.xlu0 %106
  %108 = vset.pattern.permute.xlu0 0
  %109 = vperm.xlu0 %108, %v38
  %v110 = vpop.permute.xlu0 %109
  %111 = vset.pattern.permute.xlu0 0
  %112 = vperm.xlu0 %111, %v39
  %v113 = vpop.permute.xlu0 %112
  %114 = vset.pattern.permute.xlu0 0
  %115 = vperm.xlu0 %114, %v40
  %v116 = vpop.permute.xlu0 %115
  %117 = vset.pattern.permute.xlu0 0
  %118 = vperm.xlu0 %117, %v41
  %v119 = vpop.permute.xlu0 %118
  %120 = vset.pattern.permute.xlu0 0
  %121 = vperm.xlu0 %120, %v42
  %v122 = vpop.permute.xlu0 %121
  %123 = vset.pattern.permute.xlu0 0
  %124 = vperm.xlu0 %123, %v43
  %v125 = vpop.permute.xlu0 %124
  %vm126 = vcmp.eq.s32.totalorder %v45, %v50
  %vm127 = vcmp.eq.s32.totalorder %v46, %v50
  %vm128 = vcmp.eq.s32.totalorder %v47, %v50
  %vm129 = vcmp.eq.s32.totalorder %v45, %v53
  %vm130 = vcmp.eq.s32.totalorder %v46, %v53
  %vm131 = vcmp.eq.s32.totalorder %v47, %v53
  %vm132 = vcmp.eq.s32.totalorder %v45, %v56
  %vm133 = vcmp.eq.s32.totalorder %v46, %v56
  %vm134 = vcmp.eq.s32.totalorder %v47, %v56
  %vm135 = vcmp.eq.s32.totalorder %v45, %v59
  %vm136 = vcmp.eq.s32.totalorder %v46, %v59
  %vm137 = vcmp.eq.s32.totalorder %v47, %v59
  %vm138 = vcmp.eq.s32.totalorder %v45, %v62
  %vm139 = vcmp.eq.s32.totalorder %v46, %v62
  %vm140 = vcmp.eq.s32.totalorder %v47, %v62
  %vm141 = vcmp.eq.s32.totalorder %v45, %v65
  %vm142 = vcmp.eq.s32.totalorder %v46, %v65
  %vm143 = vcmp.eq.s32.totalorder %v47, %v65
  %vm144 = vcmp.eq.s32.totalorder %v45, %v68
  %vm145 = vcmp.eq.s32.totalorder %v46, %v68
  %vm146 = vcmp.eq.s32.totalorder %v47, %v68
  %vm147 = vcmp.eq.s32.totalorder %v45, %v71
  %vm148 = vcmp.eq.s32.totalorder %v46, %v71
  %vm149 = vcmp.eq.s32.totalorder %v47, %v71
  %vm150 = vcmp.eq.s32.totalorder %v45, %v74
  %vm151 = vcmp.eq.s32.totalorder %v46, %v74
  %vm152 = vcmp.eq.s32.totalorder %v47, %v74
  %vm153 = vcmp.eq.s32.totalorder %v45, %v77
  %vm154 = vcmp.eq.s32.totalorder %v46, %v77
  %vm155 = vcmp.eq.s32.totalorder %v47, %v77
  %vm156 = vcmp.eq.s32.totalorder %v45, %v80
  %vm157 = vcmp.eq.s32.totalorder %v46, %v80
  %vm158 = vcmp.eq.s32.totalorder %v47, %v80
  %vm159 = vcmp.eq.s32.totalorder %v45, %v83
  %vm160 = vcmp.eq.s32.totalorder %v46, %v83
  %vm161 = vcmp.eq.s32.totalorder %v47, %v83
  %vm162 = vcmp.eq.s32.totalorder %v45, %v86
  %vm163 = vcmp.eq.s32.totalorder %v46, %v86
  %vm164 = vcmp.eq.s32.totalorder %v47, %v86
  %vm165 = vcmp.eq.s32.totalorder %v45, %v89
  %vm166 = vcmp.eq.s32.totalorder %v46, %v89
  %vm167 = vcmp.eq.s32.totalorder %v47, %v89
  %vm168 = vcmp.eq.s32.totalorder %v45, %v92
  %vm169 = vcmp.eq.s32.totalorder %v46, %v92
  %vm170 = vcmp.eq.s32.totalorder %v47, %v92
  %vm171 = vcmp.eq.s32.totalorder %v45, %v95
  %vm172 = vcmp.eq.s32.totalorder %v46, %v95
  %vm173 = vcmp.eq.s32.totalorder %v47, %v95
  %vm174 = vcmp.eq.s32.totalorder %v45, %v98
  %vm175 = vcmp.eq.s32.totalorder %v46, %v98
  %vm176 = vcmp.eq.s32.totalorder %v47, %v98
  %vm177 = vcmp.eq.s32.totalorder %v45, %v101
  %vm178 = vcmp.eq.s32.totalorder %v46, %v101
  %vm179 = vcmp.eq.s32.totalorder %v47, %v101
  %vm180 = vcmp.eq.s32.totalorder %v45, %v104
  %vm181 = vcmp.eq.s32.totalorder %v46, %v104
  %vm182 = vcmp.eq.s32.totalorder %v47, %v104
  %vm183 = vcmp.eq.s32.totalorder %v45, %v107
  %vm184 = vcmp.eq.s32.totalorder %v46, %v107
  %vm185 = vcmp.eq.s32.totalorder %v47, %v107
  %vm186 = vcmp.eq.s32.totalorder %v45, %v110
  %vm187 = vcmp.eq.s32.totalorder %v46, %v110
  %vm188 = vcmp.eq.s32.totalorder %v47, %v110
  %vm189 = vcmp.eq.s32.totalorder %v45, %v113
  %vm190 = vcmp.eq.s32.totalorder %v46, %v113
  %vm191 = vcmp.eq.s32.totalorder %v47, %v113
  %vm192 = vcmp.eq.s32.totalorder %v45, %v116
  %vm193 = vcmp.eq.s32.totalorder %v46, %v116
  %vm194 = vcmp.eq.s32.totalorder %v47, %v116
  %vm195 = vcmp.eq.s32.totalorder %v45, %v119
  %vm196 = vcmp.eq.s32.totalorder %v46, %v119
  %vm197 = vcmp.eq.s32.totalorder %v47, %v119
  %vm198 = vcmp.eq.s32.totalorder %v45, %v122
  %vm199 = vcmp.eq.s32.totalorder %v46, %v122
  %vm200 = vcmp.eq.s32.totalorder %v47, %v122
  %vm201 = vcmp.eq.s32.totalorder %v45, %v125
  %vm202 = vcmp.eq.s32.totalorder %v46, %v125
  %vm203 = vcmp.eq.s32.totalorder %v47, %v125
  %v204 = vsel %vm126, 1, 0
  %v205 = vsel %vm127, 1, 0
  %v206 = vsel %vm128, 1, 0
  %v207 = vsel %vm129, 1, 0
  %v208 = vsel %vm130, 1, 0
  %v209 = vsel %vm131, 1, 0
  %v210 = vsel %vm132, 1, 0
  %v211 = vsel %vm133, 1, 0
  %v212 = vsel %vm134, 1, 0
  %v213 = vsel %vm135, 1, 0
  %v214 = vsel %vm136, 1, 0
  %v215 = vsel %vm137, 1, 0
  %v216 = vsel %vm138, 1, 0
  %v217 = vsel %vm139, 1, 0
  %v218 = vsel %vm140, 1, 0
  %v219 = vsel %vm141, 1, 0
  %v220 = vsel %vm142, 1, 0
  %v221 = vsel %vm143, 1, 0
  %v222 = vsel %vm144, 1, 0
  %v223 = vsel %vm145, 1, 0
  %v224 = vsel %vm146, 1, 0
  %v225 = vsel %vm147, 1, 0
  %v226 = vsel %vm148, 1, 0
  %v227 = vsel %vm149, 1, 0
  %v228 = vsel %vm150, 1, 0
  %v229 = vsel %vm151, 1, 0
  %v230 = vsel %vm152, 1, 0
  %v231 = vsel %vm153, 1, 0
  %v232 = vsel %vm154, 1, 0
  %v233 = vsel %vm155, 1, 0
  %v234 = vsel %vm156, 1, 0
  %v235 = vsel %vm157, 1, 0
  %v236 = vsel %vm158, 1, 0
  %v237 = vsel %vm159, 1, 0
  %v238 = vsel %vm160, 1, 0
  %v239 = vsel %vm161, 1, 0
  %v240 = vsel %vm162, 1, 0
  %v241 = vsel %vm163, 1, 0
  %v242 = vsel %vm164, 1, 0
  %v243 = vsel %vm165, 1, 0
  %v244 = vsel %vm166, 1, 0
  %v245 = vsel %vm167, 1, 0
  %v246 = vsel %vm168, 1, 0
  %v247 = vsel %vm169, 1, 0
  %v248 = vsel %vm170, 1, 0
  %v249 = vsel %vm171, 1, 0
  %v250 = vsel %vm172, 1, 0
  %v251 = vsel %vm173, 1, 0
  %v252 = vsel %vm174, 1, 0
  %v253 = vsel %vm175, 1, 0
  %v254 = vsel %vm176, 1, 0
  %v255 = vsel %vm177, 1, 0
  %v256 = vsel %vm178, 1, 0
  %v257 = vsel %vm179, 1, 0
  %v258 = vsel %vm180, 1, 0
  %v259 = vsel %vm181, 1, 0
  %v260 = vsel %vm182, 1, 0
  %v261 = vsel %vm183, 1, 0
  %v262 = vsel %vm184, 1, 0
  %v263 = vsel %vm185, 1, 0
  %v264 = vsel %vm186, 1, 0
  %v265 = vsel %vm187, 1, 0
  %v266 = vsel %vm188, 1, 0
  %v267 = vsel %vm189, 1, 0
  %v268 = vsel %vm190, 1, 0
  %v269 = vsel %vm191, 1, 0
  %v270 = vsel %vm192, 1, 0
  %v271 = vsel %vm193, 1, 0
  %v272 = vsel %vm194, 1, 0
  %v273 = vsel %vm195, 1, 0
  %v274 = vsel %vm196, 1, 0
  %v275 = vsel %vm197, 1, 0
  %v276 = vsel %vm198, 1, 0
  %v277 = vsel %vm199, 1, 0
  %v278 = vsel %vm200, 1, 0
  %v279 = vsel %vm201, 1, 0
  %v280 = vsel %vm202, 1, 0
  %v281 = vsel %vm203, 1, 0
  %v282 = vcvt.s32.f32 %v204
  %v283 = vcvt.s32.f32 %v205
  %v284 = vcvt.s32.f32 %v206
  %v285 = vcvt.s32.f32 %v207
  %v286 = vcvt.s32.f32 %v208
  %v287 = vcvt.s32.f32 %v209
  %v288 = vcvt.s32.f32 %v210
  %v289 = vcvt.s32.f32 %v211
  %v290 = vcvt.s32.f32 %v212
  %v291 = vcvt.s32.f32 %v213
  %v292 = vcvt.s32.f32 %v214
  %v293 = vcvt.s32.f32 %v215
  %v294 = vcvt.s32.f32 %v216
  %v295 = vcvt.s32.f32 %v217
  %v296 = vcvt.s32.f32 %v218
  %v297 = vcvt.s32.f32 %v219
  %v298 = vcvt.s32.f32 %v220
  %v299 = vcvt.s32.f32 %v221
  %v300 = vcvt.s32.f32 %v222
  %v301 = vcvt.s32.f32 %v223
  %v302 = vcvt.s32.f32 %v224
  %v303 = vcvt.s32.f32 %v225
  %v304 = vcvt.s32.f32 %v226
  %v305 = vcvt.s32.f32 %v227
  %v306 = vcvt.s32.f32 %v228
  %v307 = vcvt.s32.f32 %v229
  %v308 = vcvt.s32.f32 %v230
  %v309 = vcvt.s32.f32 %v231
  %v310 = vcvt.s32.f32 %v232
  %v311 = vcvt.s32.f32 %v233
  %v312 = vcvt.s32.f32 %v234
  %v313 = vcvt.s32.f32 %v235
  %v314 = vcvt.s32.f32 %v236
  %v315 = vcvt.s32.f32 %v237
  %v316 = vcvt.s32.f32 %v238
  %v317 = vcvt.s32.f32 %v239
  %v318 = vcvt.s32.f32 %v240
  %v319 = vcvt.s32.f32 %v241
  %v320 = vcvt.s32.f32 %v242
  %v321 = vcvt.s32.f32 %v243
  %v322 = vcvt.s32.f32 %v244
  %v323 = vcvt.s32.f32 %v245
  %v324 = vcvt.s32.f32 %v246
  %v325 = vcvt.s32.f32 %v247
  %v326 = vcvt.s32.f32 %v248
  %v327 = vcvt.s32.f32 %v249
  %v328 = vcvt.s32.f32 %v250
  %v329 = vcvt.s32.f32 %v251
  %v330 = vcvt.s32.f32 %v252
  %v331 = vcvt.s32.f32 %v253
  %v332 = vcvt.s32.f32 %v254
  %v333 = vcvt.s32.f32 %v255
  %v334 = vcvt.s32.f32 %v256
  %v335 = vcvt.s32.f32 %v257
  %v336 = vcvt.s32.f32 %v258
  %v337 = vcvt.s32.f32 %v259
  %v338 = vcvt.s32.f32 %v260
  %v339 = vcvt.s32.f32 %v261
  %v340 = vcvt.s32.f32 %v262
  %v341 = vcvt.s32.f32 %v263
  %v342 = vcvt.s32.f32 %v264
  %v343 = vcvt.s32.f32 %v265
  %v344 = vcvt.s32.f32 %v266
  %v345 = vcvt.s32.f32 %v267
  %v346 = vcvt.s32.f32 %v268
  %v347 = vcvt.s32.f32 %v269
  %v348 = vcvt.s32.f32 %v270
  %v349 = vcvt.s32.f32 %v271
  %v350 = vcvt.s32.f32 %v272
  %v351 = vcvt.s32.f32 %v273
  %v352 = vcvt.s32.f32 %v274
  %v353 = vcvt.s32.f32 %v275
  %v354 = vcvt.s32.f32 %v276
  %v355 = vcvt.s32.f32 %v277
  %v356 = vcvt.s32.f32 %v278
  %v357 = vcvt.s32.f32 %v279
  %v358 = vcvt.s32.f32 %v280
  %v359 = vcvt.s32.f32 %v281
  %v360 = vpack.c.bf16 %v285, %v282
  %v361 = vpack.c.bf16 %v286, %v283
  %v362 = vpack.c.bf16 %v287, %v284
  %v363 = vpack.c.bf16 %v291, %v288
  %v364 = vpack.c.bf16 %v292, %v289
  %v365 = vpack.c.bf16 %v293, %v290
  %v366 = vpack.c.bf16 %v297, %v294
  %v367 = vpack.c.bf16 %v298, %v295
  %v368 = vpack.c.bf16 %v299, %v296
  %v369 = vpack.c.bf16 %v303, %v300
  %v370 = vpack.c.bf16 %v304, %v301
  %v371 = vpack.c.bf16 %v305, %v302
  %v372 = vpack.c.bf16 %v309, %v306
  %v373 = vpack.c.bf16 %v310, %v307
  %v374 = vpack.c.bf16 %v311, %v308
  %v375 = vpack.c.bf16 %v315, %v312
  %v376 = vpack.c.bf16 %v316, %v313
  %v377 = vpack.c.bf16 %v317, %v314
  %v378 = vpack.c.bf16 %v321, %v318
  %v379 = vpack.c.bf16 %v322, %v319
  %v380 = vpack.c.bf16 %v323, %v320
  %v381 = vpack.c.bf16 %v327, %v324
  %v382 = vpack.c.bf16 %v328, %v325
  %v383 = vpack.c.bf16 %v329, %v326
  %v384 = vpack.c.bf16 %v333, %v330
  %v385 = vpack.c.bf16 %v334, %v331
  %v386 = vpack.c.bf16 %v335, %v332
  %v387 = vpack.c.bf16 %v339, %v336
  %v388 = vpack.c.bf16 %v340, %v337
  %v389 = vpack.c.bf16 %v341, %v338
  %v390 = vpack.c.bf16 %v345, %v342
  %v391 = vpack.c.bf16 %v346, %v343
  %v392 = vpack.c.bf16 %v347, %v344
  %v393 = vpack.c.bf16 %v351, %v348
  %v394 = vpack.c.bf16 %v352, %v349
  %v395 = vpack.c.bf16 %v353, %v350
  %v396 = vpack.c.bf16 %v357, %v354
  %v397 = vpack.c.bf16 %v358, %v355
  %v398 = vpack.c.bf16 %v359, %v356
  %v399 = vld [vmem:[%s1] sm:$0xf]
  %v400 = vld [vmem:[%s1 + $0x4] sm:$0xf]
  %v401 = vld [vmem:[%s1 + $0x8] sm:$0xf]
  %v402 = vld [vmem:[%s1 + $0xc] sm:$0xf]
  %v403 = vld [vmem:[%s1 + $0x10] sm:$0xf]
  %v404 = vld [vmem:[%s1 + $0x14] sm:$0xf]
  %v405 = vld [vmem:[%s1 + $0x18] sm:$0xf]
  %v406 = vld [vmem:[%s1 + $0x1c] sm:$0xf]
  %v407 = vld [vmem:[%s1 + $0x20] sm:$0xf]
  %v408 = vld [vmem:[%s1 + $0x24] sm:$0xf]
  %v409 = vld [vmem:[%s1 + $0x28] sm:$0xf]
  %v410 = vld [vmem:[%s1 + $0x2c] sm:$0xf]
  %v411 = vld [vmem:[%s1 + $0x30] sm:$0xf]
  %v412 = vld [vmem:[%s1 + $0x34] sm:$0xf]
  %v413 = vld [vmem:[%s1 + $0x38] sm:$0xf]
  %v414 = vld [vmem:[%s1 + $0x3c] sm:$0xf]
  %v415 = vld [vmem:[%s1 + $0x40] sm:$0xf]
  %v416 = vld [vmem:[%s1 + $0x44] sm:$0xf]
  %v417 = vld [vmem:[%s1 + $0x48] sm:$0xf]
  %v418 = vld [vmem:[%s1 + $0x4c] sm:$0xf]
  %v419 = vld [vmem:[%s1 + $0x50] sm:$0xf]
  %v420 = vld [vmem:[%s1 + $0x54] sm:$0xf]
  %v421 = vld [vmem:[%s1 + $0x58] sm:$0xf]
  %v422 = vld [vmem:[%s1 + $0x5c] sm:$0xf]
  %v423 = vld [vmem:[%s1 + $0x60] sm:$0xf]
  %v424 = vld [vmem:[%s1 + $0x64] sm:$0xf]
  %v425 = vld [vmem:[%s1 + $0x68] sm:$0xf]
  %v426 = vld [vmem:[%s1 + $0x6c] sm:$0xf]
  %v427 = vld [vmem:[%s1 + $0x70] sm:$0xf]
  %v428 = vld [vmem:[%s1 + $0x74] sm:$0xf]
  %v429 = vld [vmem:[%s1 + $0x78] sm:$0xf]
  %v430 = vld [vmem:[%s1 + $0x7c] sm:$0xf]
  %v431 = vld [vmem:[%s1 + $0x80] sm:$0xf]
  %v432 = vld [vmem:[%s1 + $0x84] sm:$0xf]
  %v433 = vld [vmem:[%s1 + $0x88] sm:$0xf]
  %v434 = vld [vmem:[%s1 + $0x8c] sm:$0xf]
  %v435 = vld [vmem:[%s1 + $0x90] sm:$0xf]
  %v436 = vld [vmem:[%s1 + $0x94] sm:$0xf]
  %v437 = vld [vmem:[%s1 + $0x98] sm:$0xf]
  %v438 = vld [vmem:[%s1 + $0x9c] sm:$0xf]
  %v439 = vld [vmem:[%s1 + $0xa0] sm:$0xf]
  %v440 = vld [vmem:[%s1 + $0xa4] sm:$0xf]
  %v441 = vld [vmem:[%s1 + $0xa8] sm:$0xf]
  %v442 = vld [vmem:[%s1 + $0xac] sm:$0xf]
  %v443 = vld [vmem:[%s1 + $0xb0] sm:$0xf]
  %v489 = vunpack.c.l.b16 %v399
  %v490 = vunpack.c.l.b16 %v400
  %v491 = vunpack.c.l.b16 %v401
  %v492 = vunpack.c.l.b16 %v402
  %v493 = vunpack.c.l.b16 %v403
  %v494 = vunpack.c.l.b16 %v404
  %v495 = vunpack.c.l.b16 %v405
  %v496 = vunpack.c.l.b16 %v406
  %v497 = vunpack.c.l.b16 %v407
  %v498 = vunpack.c.l.b16 %v408
  %v499 = vunpack.c.l.b16 %v409
  %v500 = vunpack.c.l.b16 %v410
  %v501 = vunpack.c.l.b16 %v411
  %v502 = vunpack.c.l.b16 %v412
  %v503 = vunpack.c.l.b16 %v413
  %v504 = vunpack.c.l.b16 %v414
  %v505 = vunpack.c.l.b16 %v415
  %v506 = vunpack.c.l.b16 %v416
  %v507 = vunpack.c.l.b16 %v417
  %v508 = vunpack.c.l.b16 %v418
  %v509 = vunpack.c.l.b16 %v419
  %v510 = vunpack.c.l.b16 %v420
  %v511 = vunpack.c.l.b16 %v421
  %v512 = vunpack.c.l.b16 %v422
  %v513 = vunpack.c.l.b16 %v423
  %v514 = vunpack.c.l.b16 %v424
  %v515 = vunpack.c.l.b16 %v425
  %v516 = vunpack.c.l.b16 %v426
  %v517 = vunpack.c.l.b16 %v427
  %v518 = vunpack.c.l.b16 %v428
  %v519 = vunpack.c.l.b16 %v429
  %v520 = vunpack.c.l.b16 %v430
  %v521 = vunpack.c.l.b16 %v431
  %v522 = vunpack.c.l.b16 %v432
  %v523 = vunpack.c.l.b16 %v433
  %v524 = vunpack.c.l.b16 %v434
  %v525 = vunpack.c.l.b16 %v435
  %v526 = vunpack.c.l.b16 %v436
  %v527 = vunpack.c.l.b16 %v437
  %v528 = vunpack.c.l.b16 %v438
  %v529 = vunpack.c.l.b16 %v439
  %v530 = vunpack.c.l.b16 %v440
  %v531 = vunpack.c.l.b16 %v441
  %v532 = vunpack.c.l.b16 %v442
  %v533 = vunpack.c.l.b16 %v443
  %v534 = vpack.c.b16 %v490, %v489
  %v535 = vpack.c.b16 %v492, %v491
  %v536 = vpack.c.b16 %v494, %v493
  %v537 = vpack.c.b16 %v496, %v495
  %v538 = vpack.c.b16 %v498, %v497
  %v539 = vpack.c.b16 %v500, %v499
  %v540 = vpack.c.b16 %v502, %v501
  %v541 = vpack.c.b16 %v504, %v503
  %v542 = vpack.c.b16 %v506, %v505
  %v543 = vpack.c.b16 %v508, %v507
  %v544 = vpack.c.b16 %v510, %v509
  %v545 = vpack.c.b16 %v512, %v511
  %v546 = vpack.c.b16 %v514, %v513
  %v547 = vpack.c.b16 %v516, %v515
  %v548 = vpack.c.b16 %v518, %v517
  %v549 = vpack.c.b16 %v520, %v519
  %v550 = vpack.c.b16 %v522, %v521
  %v551 = vpack.c.b16 %v524, %v523
  %v552 = vpack.c.b16 %v526, %v525
  %v553 = vpack.c.b16 %v528, %v527
  %v554 = vpack.c.b16 %v530, %v529
  %v555 = vpack.c.b16 %v532, %v531
  %v556 = vpack.c.b16 %v533, %v533
  %vm579 = vcmask 850944
  %v581 = vsel %vm579, %v362, 0
  %v584 = vsel %vm579, %v365, 0
  %v587 = vsel %vm579, %v368, 0
  %v590 = vsel %vm579, %v371, 0
  %v593 = vsel %vm579, %v374, 0
  %v596 = vsel %vm579, %v377, 0
  %v599 = vsel %vm579, %v380, 0
  %v602 = vsel %vm579, %v383, 0
  %v605 = vsel %vm579, %v386, 0
  %v608 = vsel %vm579, %v389, 0
  %v611 = vsel %vm579, %v392, 0
  %v614 = vsel %vm579, %v395, 0
  %v617 = vsel %vm579, %v398, 0
  %vm619 = vcmask 1043456
  %v621 = vsel %vm619, %v556, 0
  %623 = vmatprep.subr.bf16.mxu0 0
  %624 = vmatpush1.bf16.msra.mxu0 %v534
  %625 = vmatprep.subr.bf16.mxu0 0
  %626 = vmatpush1.bf16.msra.mxu0 %v535
  %627 = vmatprep.subr.bf16.mxu0 0
  %628 = vmatpush1.bf16.msra.mxu0 %v536
  %629 = vmatprep.subr.bf16.mxu0 0
  %630 = vmatpush1.bf16.msra.mxu0 %v537
  %631 = vmatprep.subr.bf16.mxu0 0
  %632 = vmatpush1.bf16.msra.mxu0 %v538
  %633 = vmatprep.subr.bf16.mxu0 0
  %634 = vmatpush1.bf16.msra.mxu0 %v539
  %635 = vmatprep.subr.bf16.mxu0 0
  %636 = vmatpush1.bf16.msra.mxu0 %v540
  %637 = vmatprep.subr.bf16.mxu0 0
  %638 = vmatpush1.bf16.msra.mxu0 %v541
  %639 = vmatprep.subr.bf16.mxu0 0
  %640 = vmatpush1.bf16.msra.mxu0 %v542
  %641 = vmatprep.subr.bf16.mxu0 0
  %642 = vmatpush1.bf16.msra.mxu0 %v543
  %643 = vmatprep.subr.bf16.mxu0 0
  %644 = vmatpush1.bf16.msra.mxu0 %v544
  %645 = vmatprep.subr.bf16.mxu0 0
  %646 = vmatpush1.bf16.msra.mxu0 %v545
  %647 = vmatprep.subr.bf16.mxu0 0
  %648 = vmatpush1.bf16.msra.mxu0 %v546
  %649 = vmatprep.subr.bf16.mxu0 0
  %650 = vmatpush1.bf16.msra.mxu0 %v547
  %651 = vmatprep.subr.bf16.mxu0 0
  %652 = vmatpush1.bf16.msra.mxu0 %v548
  %653 = vmatprep.subr.bf16.mxu0 0
  %654 = vmatpush1.bf16.msra.mxu0 %v549
  %655 = vmatprep.mubr.bf16.mxu0 %v361
  %656 = vmatmul.mubr.bf16.gmra.mrb[0].mxu0 %v360
  %v657 = vpop.f32.mrb[0].mxu0
  %v658 = vadd.f32 0.0, %v657
  %v659 = vpop.f32.mrb[0].mxu0
  %v660 = vpop.f32.mrb[0].mxu0
  %v661 = vadd.f32 0.0, %v660
  %v662 = vpop.f32.mrb[0].mxu0
  %663 = vmatprep.mubr.bf16.mxu0 %v364
  %664 = vmatmul.mubr.bf16.gmra.mrb[0].mxu0 %v363
  %v665 = vpop.f32.mrb[0].mxu0
  %v666 = vadd.f32 0.0, %v665
  %v667 = vpop.f32.mrb[0].mxu0
  %v668 = vpop.f32.mrb[0].mxu0
  %v669 = vadd.f32 0.0, %v668
  %v670 = vpop.f32.mrb[0].mxu0
  %671 = vmatprep.mubr.bf16.mxu0 %v367
  %672 = vmatmul.mubr.bf16.gmra.mrb[0].mxu0 %v366
  %v673 = vpop.f32.mrb[0].mxu0
  %v674 = vadd.f32 0.0, %v673
  %v675 = vpop.f32.mrb[0].mxu0
  %v676 = vpop.f32.mrb[0].mxu0
  %v677 = vadd.f32 0.0, %v676
  %v678 = vpop.f32.mrb[0].mxu0
  %679 = vmatprep.mubr.bf16.mxu0 %v370
  %680 = vmatmul.mubr.bf16.gmra.mrb[0].mxu0 %v369
  %v681 = vpop.f32.mrb[0].mxu0
  %v682 = vadd.f32 0.0, %v681
  %v683 = vpop.f32.mrb[0].mxu0
  %v684 = vpop.f32.mrb[0].mxu0
  %v685 = vadd.f32 0.0, %v684
  %v686 = vpop.f32.mrb[0].mxu0
  %687 = vmatprep.mubr.bf16.mxu0 %v373
  %688 = vmatmul.mubr.bf16.gmra.mrb[0].mxu0 %v372
  %v689 = vpop.f32.mrb[0].mxu0
  %v690 = vadd.f32 0.0, %v689
  %v691 = vpop.f32.mrb[0].mxu0
  %v692 = vpop.f32.mrb[0].mxu0
  %v693 = vadd.f32 0.0, %v692
  %v694 = vpop.f32.mrb[0].mxu0
  %695 = vmatprep.mubr.bf16.mxu0 %v376
  %696 = vmatmul.mubr.bf16.gmra.mrb[0].mxu0 %v375
  %v697 = vpop.f32.mrb[0].mxu0
  %v698 = vadd.f32 0.0, %v697
  %v699 = vpop.f32.mrb[0].mxu0
  %v700 = vpop.f32.mrb[0].mxu0
  %v701 = vadd.f32 0.0, %v700
  %v702 = vpop.f32.mrb[0].mxu0
  %703 = vmatprep.mubr.bf16.mxu0 %v379
  %704 = vmatmul.mubr.bf16.gmra.mrb[0].mxu0 %v378
  %v705 = vpop.f32.mrb[0].mxu0
  %v706 = vadd.f32 0.0, %v705
  %v707 = vpop.f32.mrb[0].mxu0
  %v708 = vpop.f32.mrb[0].mxu0
  %v709 = vadd.f32 0.0, %v708
  %v710 = vpop.f32.mrb[0].mxu0
  %711 = vmatprep.mubr.bf16.mxu0 %v382
  %712 = vmatmul.mubr.bf16.gmra.mrb[0].mxu0 %v381
  %v713 = vpop.f32.mrb[0].mxu0
  %v714 = vadd.f32 0.0, %v713
  %v715 = vpop.f32.mrb[0].mxu0
  %v716 = vpop.f32.mrb[0].mxu0
  %v717 = vadd.f32 0.0, %v716
  %v718 = vpop.f32.mrb[0].mxu0
  %719 = vmatprep.mubr.bf16.mxu0 %v385
  %720 = vmatmul.mubr.bf16.gmra.mrb[0].mxu0 %v384
  %v721 = vpop.f32.mrb[0].mxu0
  %v722 = vadd.f32 0.0, %v721
  %v723 = vpop.f32.mrb[0].mxu0
  %v724 = vpop.f32.mrb[0].mxu0
  %v725 = vadd.f32 0.0, %v724
  %v726 = vpop.f32.mrb[0].mxu0
  %727 = vmatprep.mubr.bf16.mxu0 %v388
  %728 = vmatmul.mubr.bf16.gmra.mrb[0].mxu0 %v387
  %v729 = vpop.f32.mrb[0].mxu0
  %v730 = vadd.f32 0.0, %v729
  %v731 = vpop.f32.mrb[0].mxu0
  %v732 = vpop.f32.mrb[0].mxu0
  %v733 = vadd.f32 0.0, %v732
  %v734 = vpop.f32.mrb[0].mxu0
  %735 = vmatprep.mubr.bf16.mxu0 %v391
  %736 = vmatmul.mubr.bf16.gmra.mrb[0].mxu0 %v390
  %v737 = vpop.f32.mrb[0].mxu0
  %v738 = vadd.f32 0.0, %v737
  %v739 = vpop.f32.mrb[0].mxu0
  %v740 = vpop.f32.mrb[0].mxu0
  %v741 = vadd.f32 0.0, %v740
  %v742 = vpop.f32.mrb[0].mxu0
  %743 = vmatprep.mubr.bf16.mxu0 %v394
  %744 = vmatmul.mubr.bf16.gmra.mrb[0].mxu0 %v393
  %v745 = vpop.f32.mrb[0].mxu0
  %v746 = vadd.f32 0.0, %v745
  %v747 = vpop.f32.mrb[0].mxu0
  %v748 = vpop.f32.mrb[0].mxu0
  %v749 = vadd.f32 0.0, %v748
  %v750 = vpop.f32.mrb[0].mxu0
  %751 = vmatprep.mubr.bf16.mxu0 %v397
  %752 = vmatmul.mubr.bf16.gmra.mrb[0].mxu0 %v396
  %v753 = vpop.f32.mrb[0].mxu0
  %v754 = vadd.f32 0.0, %v753
  %v755 = vpop.f32.mrb[0].mxu0
  %v756 = vpop.f32.mrb[0].mxu0
  %v757 = vadd.f32 0.0, %v756
  %v758 = vpop.f32.mrb[0].mxu0
  %759 = vdwg.mxu0
  %760 = vmatprep.subr.bf16.mxu0 0
  %761 = vmatpush1.bf16.msra.mxu0 %v550
  %762 = vmatprep.subr.bf16.mxu0 0
  %763 = vmatpush1.bf16.msra.mxu0 %v551
  %764 = vmatprep.subr.bf16.mxu0 0
  %765 = vmatpush1.bf16.msra.mxu0 %v552
  %766 = vmatprep.subr.bf16.mxu0 0
  %767 = vmatpush1.bf16.msra.mxu0 %v553
  %768 = vmatprep.subr.bf16.mxu0 0
  %769 = vmatpush1.bf16.msra.mxu0 %v554
  %770 = vmatprep.subr.bf16.mxu0 0
  %771 = vmatpush1.bf16.msra.mxu0 %v555
  %772 = vmatprep.subr.bf16.mxu0 0
  %773 = vmatpush1.bf16.msra.mxu0 %v621
  %774 = vmatprep.subr.bf16.mxu0 0
  %775 = vmatpush1.bf16.msra.mxu0 0
  %776 = vmatprep.subr.bf16.mxu0 0
  %777 = vmatpush1.bf16.msra.mxu0 0
  %778 = vmatprep.subr.bf16.mxu0 0
  %779 = vmatpush1.bf16.msra.mxu0 0
  %780 = vmatprep.subr.bf16.mxu0 0
  %781 = vmatpush1.bf16.msra.mxu0 0
  %782 = vmatprep.subr.bf16.mxu0 0
  %783 = vmatpush1.bf16.msra.mxu0 0
  %784 = vmatprep.subr.bf16.mxu0 0
  %785 = vmatpush1.bf16.msra.mxu0 0
  %786 = vmatprep.subr.bf16.mxu0 0
  %787 = vmatpush1.bf16.msra.mxu0 0
  %788 = vmatprep.subr.bf16.mxu0 0
  %789 = vmatpush1.bf16.msra.mxu0 0
  %790 = vmatprep.subr.bf16.mxu0 0
  %791 = vmatpush1.bf16.msra.mxu0 0
  %792 = vmatprep.mubr.bf16.mxu0 0
  %793 = vmatmul.mubr.bf16.gmra.mrb[0].mxu0 %v581
  %v794 = vpop.f32.mrb[0].mxu0
  %v795 = vadd.f32 %v658, %v794
  %v796 = vpop.f32.mrb[0].mxu0
  %v797 = vpop.f32.mrb[0].mxu0
  %v798 = vadd.f32 %v661, %v797
  %v799 = vpop.f32.mrb[0].mxu0
  %800 = vmatprep.mubr.bf16.mxu0 0
  %801 = vmatmul.mubr.bf16.gmra.mrb[0].mxu0 %v584
  %v802 = vpop.f32.mrb[0].mxu0
  %v803 = vadd.f32 %v666, %v802
  %v804 = vpop.f32.mrb[0].mxu0
  %v805 = vpop.f32.mrb[0].mxu0
  %v806 = vadd.f32 %v669, %v805
  %v807 = vpop.f32.mrb[0].mxu0
  %808 = vmatprep.mubr.bf16.mxu0 0
  %809 = vmatmul.mubr.bf16.gmra.mrb[0].mxu0 %v587
  %v810 = vpop.f32.mrb[0].mxu0
  %v811 = vadd.f32 %v674, %v810
  %v812 = vpop.f32.mrb[0].mxu0
  %v813 = vpop.f32.mrb[0].mxu0
  %v814 = vadd.f32 %v677, %v813
  %v815 = vpop.f32.mrb[0].mxu0
  %816 = vmatprep.mubr.bf16.mxu0 0
  %817 = vmatmul.mubr.bf16.gmra.mrb[0].mxu0 %v590
  %v818 = vpop.f32.mrb[0].mxu0
  %v819 = vadd.f32 %v682, %v818
  %v820 = vpop.f32.mrb[0].mxu0
  %v821 = vpop.f32.mrb[0].mxu0
  %v822 = vadd.f32 %v685, %v821
  %v823 = vpop.f32.mrb[0].mxu0
  %824 = vmatprep.mubr.bf16.mxu0 0
  %825 = vmatmul.mubr.bf16.gmra.mrb[0].mxu0 %v593
  %v826 = vpop.f32.mrb[0].mxu0
  %v827 = vadd.f32 %v690, %v826
  %v828 = vpop.f32.mrb[0].mxu0
  %v829 = vpop.f32.mrb[0].mxu0
  %v830 = vadd.f32 %v693, %v829
  %v831 = vpop.f32.mrb[0].mxu0
  %832 = vmatprep.mubr.bf16.mxu0 0
  %833 = vmatmul.mubr.bf16.gmra.mrb[0].mxu0 %v596
  %v834 = vpop.f32.mrb[0].mxu0
  %v835 = vadd.f32 %v698, %v834
  %v836 = vpop.f32.mrb[0].mxu0
  %v837 = vpop.f32.mrb[0].mxu0
  %v838 = vadd.f32 %v701, %v837
  %v839 = vpop.f32.mrb[0].mxu0
  %840 = vmatprep.mubr.bf16.mxu0 0
  %841 = vmatmul.mubr.bf16.gmra.mrb[0].mxu0 %v599
  %v842 = vpop.f32.mrb[0].mxu0
  %v843 = vadd.f32 %v706, %v842
  %v844 = vpop.f32.mrb[0].mxu0
  %v845 = vpop.f32.mrb[0].mxu0
  %v846 = vadd.f32 %v709, %v845
  %v847 = vpop.f32.mrb[0].mxu0
  %848 = vmatprep.mubr.bf16.mxu0 0
  %849 = vmatmul.mubr.bf16.gmra.mrb[0].mxu0 %v602
  %v850 = vpop.f32.mrb[0].mxu0
  %v851 = vadd.f32 %v714, %v850
  %v852 = vpop.f32.mrb[0].mxu0
  %v853 = vpop.f32.mrb[0].mxu0
  %v854 = vadd.f32 %v717, %v853
  %v855 = vpop.f32.mrb[0].mxu0
  %856 = vmatprep.mubr.bf16.mxu0 0
  %857 = vmatmul.mubr.bf16.gmra.mrb[0].mxu0 %v605
  %v858 = vpop.f32.mrb[0].mxu0
  %v859 = vadd.f32 %v722, %v858
  %v860 = vpop.f32.mrb[0].mxu0
  %v861 = vpop.f32.mrb[0].mxu0
  %v862 = vadd.f32 %v725, %v861
  %v863 = vpop.f32.mrb[0].mxu0
  %864 = vmatprep.mubr.bf16.mxu0 0
  %865 = vmatmul.mubr.bf16.gmra.mrb[0].mxu0 %v608
  %v866 = vpop.f32.mrb[0].mxu0
  %v867 = vadd.f32 %v730, %v866
  %v868 = vpop.f32.mrb[0].mxu0
  %v869 = vpop.f32.mrb[0].mxu0
  %v870 = vadd.f32 %v733, %v869
  %v871 = vpop.f32.mrb[0].mxu0
  %872 = vmatprep.mubr.bf16.mxu0 0
  %873 = vmatmul.mubr.bf16.gmra.mrb[0].mxu0 %v611
  %v874 = vpop.f32.mrb[0].mxu0
  %v875 = vadd.f32 %v738, %v874
  %v876 = vpop.f32.mrb[0].mxu0
  %v877 = vpop.f32.mrb[0].mxu0
  %v878 = vadd.f32 %v741, %v877
  %v879 = vpop.f32.mrb[0].mxu0
  %880 = vmatprep.mubr.bf16.mxu0 0
  %881 = vmatmul.mubr.bf16.gmra.mrb[0].mxu0 %v614
  %v882 = vpop.f32.mrb[0].mxu0
  %v883 = vadd.f32 %v746, %v882
  %v884 = vpop.f32.mrb[0].mxu0
  %v885 = vpop.f32.mrb[0].mxu0
  %v886 = vadd.f32 %v749, %v885
  %v887 = vpop.f32.mrb[0].mxu0
  %888 = vmatprep.mubr.bf16.mxu0 0
  %889 = vmatmul.mubr.bf16.gmra.mrb[0].mxu0 %v617
  %v890 = vpop.f32.mrb[0].mxu0
  %v891 = vadd.f32 %v754, %v890
  %v892 = vpop.f32.mrb[0].mxu0
  %v893 = vpop.f32.mrb[0].mxu0
  %v894 = vadd.f32 %v757, %v893
  %v895 = vpop.f32.mrb[0].mxu0
  %896 = vdwg.mxu0
  %v897 = vpack.c.bf16 %v806, %v803
  %v898 = vpack.c.bf16 %v814, %v811
  %v899 = vpack.c.bf16 %v822, %v819
  %v900 = vpack.c.bf16 %v830, %v827
  %v901 = vpack.c.bf16 %v838, %v835
  %v902 = vpack.c.bf16 %v846, %v843
  %v903 = vpack.c.bf16 %v854, %v851
  %v904 = vpack.c.bf16 %v862, %v859
  %v905 = vpack.c.bf16 %v870, %v867
  %v906 = vpack.c.bf16 %v878, %v875
  %v907 = vpack.c.bf16 %v886, %v883
  %v908 = vpack.c.bf16 %v894, %v891
  %919 = vrot.lane.b32.xlu0 %v898, 16
  %v920 = vpop.permute.xlu0 %919
  %921 = vrot.lane.b32.xlu0 %v899, 16
  %v922 = vpop.permute.xlu0 %921
  %923 = vrot.lane.b32.xlu0 %v900, 16
  %v924 = vpop.permute.xlu0 %923
  %925 = vrot.lane.b32.xlu0 %v901, 16
  %v926 = vpop.permute.xlu0 %925
  %927 = vrot.lane.b32.xlu0 %v902, 16
  %v928 = vpop.permute.xlu0 %927
  %929 = vrot.lane.b32.xlu0 %v903, 16
  %v930 = vpop.permute.xlu0 %929
  %931 = vrot.lane.b32.xlu0 %v904, 16
  %v932 = vpop.permute.xlu0 %931
  %933 = vrot.lane.b32.xlu0 %v905, 16
  %v934 = vpop.permute.xlu0 %933
  %935 = vrot.lane.b32.xlu0 %v906, 16
  %v936 = vpop.permute.xlu0 %935
  %937 = vrot.lane.b32.xlu0 %v907, 16
  %v938 = vpop.permute.xlu0 %937
  %940 = vrot.lane.b32.xlu0 %v899, 32
  %v941 = vpop.permute.xlu0 %940
  %942 = vrot.lane.b32.xlu0 %v900, 32
  %v943 = vpop.permute.xlu0 %942
  %944 = vrot.lane.b32.xlu0 %v901, 32
  %v945 = vpop.permute.xlu0 %944
  %946 = vrot.lane.b32.xlu0 %v902, 32
  %v947 = vpop.permute.xlu0 %946
  %948 = vrot.lane.b32.xlu0 %v903, 32
  %v949 = vpop.permute.xlu0 %948
  %950 = vrot.lane.b32.xlu0 %v904, 32
  %v951 = vpop.permute.xlu0 %950
  %952 = vrot.lane.b32.xlu0 %v905, 32
  %v953 = vpop.permute.xlu0 %952
  %954 = vrot.lane.b32.xlu0 %v906, 32
  %v955 = vpop.permute.xlu0 %954
  %956 = vrot.lane.b32.xlu0 %v907, 32
  %v957 = vpop.permute.xlu0 %956
  %958 = vrot.lane.b32.xlu0 %v908, 32
  %v959 = vpop.permute.xlu0 %958
  %vm960 = vcmask 130048
  %v963 = vsel %vm960, %v897, %v920
  %v966 = vsel %vm960, %v898, %v922
  %v969 = vsel %vm960, %v899, %v924
  %v972 = vsel %vm960, %v900, %v926
  %v975 = vsel %vm960, %v901, %v928
  %v978 = vsel %vm960, %v902, %v930
  %v981 = vsel %vm960, %v903, %v932
  %v984 = vsel %vm960, %v904, %v934
  %v987 = vsel %vm960, %v905, %v936
  %v990 = vsel %vm960, %v906, %v938
  %vm991 = vcmask 261120
  %v993 = vsel %vm991, %v963, %v941
  %v995 = vsel %vm991, %v966, %v943
  %v997 = vsel %vm991, %v969, %v945
  %v999 = vsel %vm991, %v972, %v947
  %v1001 = vsel %vm991, %v975, %v949
  %v1003 = vsel %vm991, %v978, %v951
  %v1005 = vsel %vm991, %v981, %v953
  %v1007 = vsel %vm991, %v984, %v955
  %v1009 = vsel %vm991, %v987, %v957
  %v1011 = vsel %vm991, %v990, %v959
  %v1012 = vld [vmem:[%s3] sm:$0x1]
  %v1013 = vlaneseq
  %v1014 = vshrl.u32 %v1013, 7
  %v1015 = vsub.s32 0, %v1014
  %v1016 = vrot.slane %v1012, %v1015
  %v1017 = vpack.c.b16 %v529, %v528
  %v1018 = vpack.c.b16 %v531, %v530
  %v1019 = vpack.c.b16 %v533, %v532
  %vm1023 = vcmask 392192
  %v1024 = vsel %vm1023, %v993, 0
  %v1026 = vsel %vm1023, %v995, 0
  %v1028 = vsel %vm1023, %v997, 0
  %v1030 = vsel %vm1023, %v999, 0
  %v1032 = vsel %vm1023, %v1001, 0
  %v1034 = vsel %vm1023, %v1003, 0
  %v1036 = vsel %vm1023, %v1005, 0
  %v1038 = vsel %vm1023, %v1007, 0
  %v1040 = vsel %vm1023, %v1009, 0
  %v1042 = vsel %vm1023, %v1011, 0
  %1044 = vmatprep.subr.bf16.mxu0 0
  %1045 = vmatpush1.bf16.msra.mxu0 %v1017
  %1046 = vmatprep.subr.bf16.mxu0 0
  %1047 = vmatpush1.bf16.msra.mxu0 %v1018
  %1048 = vmatprep.subr.bf16.mxu0 0
  %1049 = vmatpush1.bf16.msra.mxu0 %v1019
  %1050 = vmatprep.subr.bf16.mxu0 0
  %1051 = vmatpush1.bf16.msra.mxu0 0
  %1052 = vmatprep.subr.bf16.mxu0 0
  %1053 = vmatpush1.bf16.msra.mxu0 0
  %1054 = vmatprep.subr.bf16.mxu0 0
  %1055 = vmatpush1.bf16.msra.mxu0 0
  %1056 = vmatprep.subr.bf16.mxu0 0
  %1057 = vmatpush1.bf16.msra.mxu0 0
  %1058 = vmatprep.subr.bf16.mxu0 0
  %1059 = vmatpush1.bf16.msra.mxu0 0
  %1060 = vmatprep.subr.bf16.mxu0 0
  %1061 = vmatpush1.bf16.msra.mxu0 0
  %1062 = vmatprep.subr.bf16.mxu0 0
  %1063 = vmatpush1.bf16.msra.mxu0 0
  %1064 = vmatprep.subr.bf16.mxu0 0
  %1065 = vmatpush1.bf16.msra.mxu0 0
  %1066 = vmatprep.subr.bf16.mxu0 0
  %1067 = vmatpush1.bf16.msra.mxu0 0
  %1068 = vmatprep.subr.bf16.mxu0 0
  %1069 = vmatpush1.bf16.msra.mxu0 0
  %1070 = vmatprep.subr.bf16.mxu0 0
  %1071 = vmatpush1.bf16.msra.mxu0 0
  %1072 = vmatprep.subr.bf16.mxu0 0
  %1073 = vmatpush1.bf16.msra.mxu0 0
  %1074 = vmatprep.subr.bf16.mxu0 0
  %1075 = vmatpush1.bf16.msra.mxu0 0
  %1076 = vmatprep.mubr.bf16.mxu0 0
  %1077 = vmatmul.mubr.bf16.gmra.mrb[0].mxu0 %v1024
  %v1078 = vpop.f32.mrb[0].mxu0
  %v1079 = vadd.f32 %v1016, %v1078
  %v1080 = vpop.f32.mrb[0].mxu0
  %v1081 = vpop.f32.mrb[0].mxu0
  %v1082 = vadd.f32 %v1016, %v1081
  %v1083 = vpop.f32.mrb[0].mxu0
  %1084 = vmatprep.mubr.bf16.mxu0 0
  %1085 = vmatmul.mubr.bf16.gmra.mrb[0].mxu0 %v1026
  %v1086 = vpop.f32.mrb[0].mxu0
  %v1087 = vadd.f32 %v1016, %v1086
  %v1088 = vpop.f32.mrb[0].mxu0
  %v1089 = vpop.f32.mrb[0].mxu0
  %v1090 = vadd.f32 %v1016, %v1089
  %v1091 = vpop.f32.mrb[0].mxu0
  %1092 = vmatprep.mubr.bf16.mxu0 0
  %1093 = vmatmul.mubr.bf16.gmra.mrb[0].mxu0 %v1028
  %v1094 = vpop.f32.mrb[0].mxu0
  %v1095 = vadd.f32 %v1016, %v1094
  %v1096 = vpop.f32.mrb[0].mxu0
  %v1097 = vpop.f32.mrb[0].mxu0
  %v1098 = vadd.f32 %v1016, %v1097
  %v1099 = vpop.f32.mrb[0].mxu0
  %1100 = vmatprep.mubr.bf16.mxu0 0
  %1101 = vmatmul.mubr.bf16.gmra.mrb[0].mxu0 %v1030
  %v1102 = vpop.f32.mrb[0].mxu0
  %v1103 = vadd.f32 %v1016, %v1102
  %v1104 = vpop.f32.mrb[0].mxu0
  %v1105 = vpop.f32.mrb[0].mxu0
  %v1106 = vadd.f32 %v1016, %v1105
  %v1107 = vpop.f32.mrb[0].mxu0
  %1108 = vmatprep.mubr.bf16.mxu0 0
  %1109 = vmatmul.mubr.bf16.gmra.mrb[0].mxu0 %v1032
  %v1110 = vpop.f32.mrb[0].mxu0
  %v1111 = vadd.f32 %v1016, %v1110
  %v1112 = vpop.f32.mrb[0].mxu0
  %v1113 = vpop.f32.mrb[0].mxu0
  %v1114 = vadd.f32 %v1016, %v1113
  %v1115 = vpop.f32.mrb[0].mxu0
  %1116 = vmatprep.mubr.bf16.mxu0 0
  %1117 = vmatmul.mubr.bf16.gmra.mrb[0].mxu0 %v1034
  %v1118 = vpop.f32.mrb[0].mxu0
  %v1119 = vadd.f32 %v1016, %v1118
  %v1120 = vpop.f32.mrb[0].mxu0
  %v1121 = vpop.f32.mrb[0].mxu0
  %v1122 = vadd.f32 %v1016, %v1121
  %v1123 = vpop.f32.mrb[0].mxu0
  %1124 = vmatprep.mubr.bf16.mxu0 0
  %1125 = vmatmul.mubr.bf16.gmra.mrb[0].mxu0 %v1036
  %v1126 = vpop.f32.mrb[0].mxu0
  %v1127 = vadd.f32 %v1016, %v1126
  %v1128 = vpop.f32.mrb[0].mxu0
  %v1129 = vpop.f32.mrb[0].mxu0
  %v1130 = vadd.f32 %v1016, %v1129
  %v1131 = vpop.f32.mrb[0].mxu0
  %1132 = vmatprep.mubr.bf16.mxu0 0
  %1133 = vmatmul.mubr.bf16.gmra.mrb[0].mxu0 %v1038
  %v1134 = vpop.f32.mrb[0].mxu0
  %v1135 = vadd.f32 %v1016, %v1134
  %v1136 = vpop.f32.mrb[0].mxu0
  %v1137 = vpop.f32.mrb[0].mxu0
  %v1138 = vadd.f32 %v1016, %v1137
  %v1139 = vpop.f32.mrb[0].mxu0
  %1140 = vmatprep.mubr.bf16.mxu0 0
  %1141 = vmatmul.mubr.bf16.gmra.mrb[0].mxu0 %v1040
  %v1142 = vpop.f32.mrb[0].mxu0
  %v1143 = vadd.f32 %v1016, %v1142
  %v1144 = vpop.f32.mrb[0].mxu0
  %v1145 = vpop.f32.mrb[0].mxu0
  %v1146 = vadd.f32 %v1016, %v1145
  %v1147 = vpop.f32.mrb[0].mxu0
  %1148 = vmatprep.mubr.bf16.mxu0 0
  %1149 = vmatmul.mubr.bf16.gmra.mrb[0].mxu0 %v1042
  %v1150 = vpop.f32.mrb[0].mxu0
  %v1151 = vadd.f32 %v1016, %v1150
  %v1152 = vpop.f32.mrb[0].mxu0
  %v1153 = vpop.f32.mrb[0].mxu0
  %v1154 = vadd.f32 %v1016, %v1153
  %v1155 = vpop.f32.mrb[0].mxu0
  %1156 = vdwg.mxu0
  %v1157 = vmax.f32 %v1079, 0.0
  %v1158 = vmax.f32 %v1082, 0.0
  %v1159 = vmax.f32 %v1087, 0.0
  %v1160 = vmax.f32 %v1090, 0.0
  %v1161 = vmax.f32 %v1095, 0.0
  %v1162 = vmax.f32 %v1098, 0.0
  %v1163 = vmax.f32 %v1103, 0.0
  %v1164 = vmax.f32 %v1106, 0.0
  %v1165 = vmax.f32 %v1111, 0.0
  %v1166 = vmax.f32 %v1114, 0.0
  %v1167 = vmax.f32 %v1119, 0.0
  %v1168 = vmax.f32 %v1122, 0.0
  %v1169 = vmax.f32 %v1127, 0.0
  %v1170 = vmax.f32 %v1130, 0.0
  %v1171 = vmax.f32 %v1135, 0.0
  %v1172 = vmax.f32 %v1138, 0.0
  %v1173 = vmax.f32 %v1143, 0.0
  %v1174 = vmax.f32 %v1146, 0.0
  %v1175 = vmax.f32 %v1151, 0.0
  %v1176 = vmax.f32 %v1154, 0.0
  %v1177 = vmax.f32 %v1157, %v1159
  %v1178 = vmax.f32 %v1158, %v1160
  %v1179 = vmax.f32 %v1177, %v1161
  %v1180 = vmax.f32 %v1178, %v1162
  %v1181 = vmax.f32 %v1179, %v1163
  %v1182 = vmax.f32 %v1180, %v1164
  %v1183 = vmax.f32 %v1181, %v1165
  %v1184 = vmax.f32 %v1182, %v1166
  %v1185 = vmax.f32 %v1183, %v1167
  %v1186 = vmax.f32 %v1184, %v1168
  %v1187 = vmax.f32 %v1185, %v1169
  %v1188 = vmax.f32 %v1186, %v1170
  %v1189 = vmax.f32 %v1187, %v1171
  %v1190 = vmax.f32 %v1188, %v1172
  %v1191 = vmax.f32 %v1189, %v1173
  %v1192 = vmax.f32 %v1190, %v1174
  %v1193 = vmax.f32 %v1191, %v1175
  %v1194 = vmax.f32 %v1192, %v1176
  %1197 = vrot.lane.b32.xlu0 %v1193, 16
  %v1198 = vpop.permute.xlu0 %1197
  %1199 = vrot.lane.b32.xlu0 %v1194, 16
  %v1200 = vpop.permute.xlu0 %1199
  %v1203 = vsel %vm960, %v795, %v1198
  %v1204 = vsel %vm960, %v798, %v1200
  %v1205 = vld [vmem:[%s2] sm:$0xff]
  %v1206 = vld [vmem:[%s2 + $0x8] sm:$0xff]
  %v1207 = vld [vmem:[%s2 + $0x10] sm:$0xff]
  %v1208 = vld [vmem:[%s2 + $0x18] sm:$0xff]
  %v1209 = vld [vmem:[%s2 + $0x20] sm:$0xff]
  %v1210 = vld [vmem:[%s2 + $0x28] sm:$0xff]
  %v1211 = vld [vmem:[%s2 + $0x30] sm:$0xff]
  %v1212 = vld [vmem:[%s2 + $0x38] sm:$0xff]
  %s1213 = scalar_lea.vmem %s3, 1
  %v1214 = vld [vmem:[%s1213] ss:$4 sm:$0x3]
  %v1216 = vlaneseq
  %v1217 = vshrl.u32 %v1216, 7
  %v1218 = vsub.s32 0, %v1217
  %v1219 = vrot.slane %v1214, %v1218
  %v1220 = vlaneseq
  %v1221 = vshrl.u32 %v1220, 7
  %v1222 = vsub.s32 1, %v1221
  %v1223 = vrot.slane %v1214, %v1222
  %v1227 = vsel %vm991, %v1203, 0
  %v1230 = vsel %vm991, %v1204, 0
  %1232 = vmatprep.subr.mxu0 %v1206
  %1233 = vmatpush1.msra.mxu0 %v1205
  %1234 = vmatprep.subr.mxu0 %v1208
  %1235 = vmatpush1.msra.mxu0 %v1207
  %1236 = vmatprep.subr.mxu0 %v1210
  %1237 = vmatpush1.msra.mxu0 %v1209
  %1238 = vmatprep.subr.mxu0 %v1212
  %1239 = vmatpush1.msra.mxu0 %v1211
  %1240 = vmatprep.subr.mxu0 0.0
  %1241 = vmatpush1.msra.mxu0 0.0
  %1242 = vmatprep.subr.mxu0 0.0
  %1243 = vmatpush1.msra.mxu0 0.0
  %1244 = vmatprep.subr.mxu0 0.0
  %1245 = vmatpush1.msra.mxu0 0.0
  %1246 = vmatprep.subr.mxu0 0.0
  %1247 = vmatpush1.msra.mxu0 0.0
  %1248 = vmatprep.subr.mxu0 0.0
  %1249 = vmatpush1.msra.mxu0 0.0
  %1250 = vmatprep.subr.mxu0 0.0
  %1251 = vmatpush1.msra.mxu0 0.0
  %1252 = vmatprep.subr.mxu0 0.0
  %1253 = vmatpush1.msra.mxu0 0.0
  %1254 = vmatprep.subr.mxu0 0.0
  %1255 = vmatpush1.msra.mxu0 0.0
  %1256 = vmatprep.subr.mxu0 0.0
  %1257 = vmatpush1.msra.mxu0 0.0
  %1258 = vmatprep.subr.mxu0 0.0
  %1259 = vmatpush1.msra.mxu0 0.0
  %1260 = vmatprep.subr.mxu0 0.0
  %1261 = vmatpush1.msra.mxu0 0.0
  %1262 = vmatprep.subr.mxu0 0.0
  %1263 = vmatpush1.msra.mxu0 0.0
  %1264 = vmatprep.subr.mxu0 0.0
  %1265 = vmatpush1.msra.mxu0 0.0
  %1266 = vmatprep.subr.mxu0 0.0
  %1267 = vmatpush1.msra.mxu0 0.0
  %1268 = vmatprep.subr.mxu0 0.0
  %1269 = vmatpush1.msra.mxu0 0.0
  %1270 = vmatprep.subr.mxu0 0.0
  %1271 = vmatpush1.msra.mxu0 0.0
  %1272 = vmatprep.subr.mxu0 0.0
  %1273 = vmatpush1.msra.mxu0 0.0
  %1274 = vmatprep.subr.mxu0 0.0
  %1275 = vmatpush1.msra.mxu0 0.0
  %1276 = vmatprep.subr.mxu0 0.0
  %1277 = vmatpush1.msra.mxu0 0.0
  %1278 = vmatprep.subr.mxu0 0.0
  %1279 = vmatpush1.msra.mxu0 0.0
  %1280 = vmatprep.subr.mxu0 0.0
  %1281 = vmatpush1.msra.mxu0 0.0
  %1282 = vmatprep.subr.mxu0 0.0
  %1283 = vmatpush1.msra.mxu0 0.0
  %1284 = vmatprep.subr.mxu0 0.0
  %1285 = vmatpush1.msra.mxu0 0.0
  %1286 = vmatprep.subr.mxu0 0.0
  %1287 = vmatpush1.msra.mxu0 0.0
  %1288 = vmatprep.subr.mxu0 0.0
  %1289 = vmatpush1.msra.mxu0 0.0
  %1290 = vmatprep.subr.mxu0 0.0
  %1291 = vmatpush1.msra.mxu0 0.0
  %1292 = vmatprep.subr.mxu0 0.0
  %1293 = vmatpush1.msra.mxu0 0.0
  %1294 = vmatprep.subr.mxu0 0.0
  %1295 = vmatpush1.msra.mxu0 0.0
  %1296 = vmatprep.mubr.f32.mxu0 0.0
  %1297 = vmatmul.mubr.f32.gmra.mrb[0].mxu0 %v1227
  %v1298 = vpop.f32.mrb[0].mxu0
  %v1299 = vadd.f32 %v1219, %v1298
  %v1300 = vpop.f32.mrb[0].mxu0
  %v1301 = vadd.f32 %v1223, %v1300
  %1302 = vmatprep.mubr.f32.mxu0 0.0
  %1303 = vmatmul.mubr.f32.gmra.mrb[0].mxu0 %v1230
  %v1304 = vpop.f32.mrb[0].mxu0
  %v1305 = vadd.f32 %v1219, %v1304
  %v1306 = vpop.f32.mrb[0].mxu0
  %v1307 = vadd.f32 %v1223, %v1306
  %1308 = vdwg.mxu0
  %v1310 = vrot.slane %v1307, 4
  %v1313 = vrot.slane %v1299, 6
  %v1315 = vrot.slane %v1307, 6
  %v1317 = vrot.slane %v1299, 4
  %v1319 = vrot.slane %v1299, 2
  %v1321 = vrot.slane %v1307, 2
  %v1324 = vrot.slane %v1301, 4
  %v1327 = vrot.slane %v1305, 6
  %v1329 = vrot.slane %v1301, 6
  %v1331 = vrot.slane %v1305, 4
  %v1333 = vrot.slane %v1305, 2
  %v1335 = vrot.slane %v1301, 2
  %vm1337 = vcmask 1041408
  %v1338 = vsel %vm1337, %v1299, %v1310
  %v1339 = vsel %vm619, %v1338, %v1313
  %vm1340 = vcmask 1045504
  %v1341 = vsel %vm1340, %v1339, %v1315
  %v1342 = vsel %vm1337, %v1317, %v1307
  %v1343 = vsel %vm619, %v1342, %v1319
  %v1344 = vsel %vm1340, %v1343, %v1321
  %v1345 = vsel %vm1337, %v1305, %v1324
  %v1346 = vsel %vm619, %v1345, %v1327
  %v1347 = vsel %vm1340, %v1346, %v1329
  %v1348 = vsel %vm1337, %v1331, %v1301
  %v1349 = vsel %vm619, %v1348, %v1333
  %v1350 = vsel %vm1340, %v1349, %v1335
  %v1351 = vld [vmem:[%s2 + $0x40] sm:$0xff]
  %v1352 = vld [vmem:[%s2 + $0x48] sm:$0xff]
  %v1353 = vld [vmem:[%s2 + $0x50] sm:$0xff]
  %v1354 = vld [vmem:[%s2 + $0x58] sm:$0xff]
  %v1355 = vld [vmem:[%s2 + $0x60] sm:$0xff]
  %v1356 = vld [vmem:[%s2 + $0x68] sm:$0xff]
  %v1357 = vld [vmem:[%s2 + $0x70] sm:$0xff]
  %v1358 = vld [vmem:[%s2 + $0x78] sm:$0xff]
  %v1359 = vlaneseq
  %v1360 = vshrl.u32 %v1359, 7
  %vm1361 = vcmp.lt.s32.totalorder %v1360, 2
  %v1363 = vsel %vm991, 0.0, 0
  %1365 = vmatprep.subr.mxu0 %v1352
  %1366 = vmatpush1.msra.mxu0 %v1351
  %1367 = vmatprep.subr.mxu0 %v1354
  %1368 = vmatpush1.msra.mxu0 %v1353
  %1369 = vmatprep.subr.mxu0 %v1356
  %1370 = vmatpush1.msra.mxu0 %v1355
  %1371 = vmatprep.subr.mxu0 %v1358
  %1372 = vmatpush1.msra.mxu0 %v1357
  %1373 = vmatprep.subr.mxu0 0.0
  %1374 = vmatpush1.msra.mxu0 0.0
  %1375 = vmatprep.subr.mxu0 0.0
  %1376 = vmatpush1.msra.mxu0 0.0
  %1377 = vmatprep.subr.mxu0 0.0
  %1378 = vmatpush1.msra.mxu0 0.0
  %1379 = vmatprep.subr.mxu0 0.0
  %1380 = vmatpush1.msra.mxu0 0.0
  %1381 = vmatprep.subr.mxu0 0.0
  %1382 = vmatpush1.msra.mxu0 0.0
  %1383 = vmatprep.subr.mxu0 0.0
  %1384 = vmatpush1.msra.mxu0 0.0
  %1385 = vmatprep.subr.mxu0 0.0
  %1386 = vmatpush1.msra.mxu0 0.0
  %1387 = vmatprep.subr.mxu0 0.0
  %1388 = vmatpush1.msra.mxu0 0.0
  %1389 = vmatprep.subr.mxu0 0.0
  %1390 = vmatpush1.msra.mxu0 0.0
  %1391 = vmatprep.subr.mxu0 0.0
  %1392 = vmatpush1.msra.mxu0 0.0
  %1393 = vmatprep.subr.mxu0 0.0
  %1394 = vmatpush1.msra.mxu0 0.0
  %1395 = vmatprep.subr.mxu0 0.0
  %1396 = vmatpush1.msra.mxu0 0.0
  %1397 = vmatprep.subr.mxu0 0.0
  %1398 = vmatpush1.msra.mxu0 0.0
  %1399 = vmatprep.subr.mxu0 0.0
  %1400 = vmatpush1.msra.mxu0 0.0
  %1401 = vmatprep.subr.mxu0 0.0
  %1402 = vmatpush1.msra.mxu0 0.0
  %1403 = vmatprep.subr.mxu0 0.0
  %1404 = vmatpush1.msra.mxu0 0.0
  %1405 = vmatprep.subr.mxu0 0.0
  %1406 = vmatpush1.msra.mxu0 0.0
  %1407 = vmatprep.subr.mxu0 0.0
  %1408 = vmatpush1.msra.mxu0 0.0
  %1409 = vmatprep.subr.mxu0 0.0
  %1410 = vmatpush1.msra.mxu0 0.0
  %1411 = vmatprep.subr.mxu0 0.0
  %1412 = vmatpush1.msra.mxu0 0.0
  %1413 = vmatprep.subr.mxu0 0.0
  %1414 = vmatpush1.msra.mxu0 0.0
  %1415 = vmatprep.subr.mxu0 0.0
  %1416 = vmatpush1.msra.mxu0 0.0
  %1417 = vmatprep.subr.mxu0 0.0
  %1418 = vmatpush1.msra.mxu0 0.0
  %1419 = vmatprep.subr.mxu0 0.0
  %1420 = vmatpush1.msra.mxu0 0.0
  %1421 = vmatprep.subr.mxu0 0.0
  %1422 = vmatpush1.msra.mxu0 0.0
  %1423 = vmatprep.subr.mxu0 0.0
  %1424 = vmatpush1.msra.mxu0 0.0
  %1425 = vmatprep.subr.mxu0 0.0
  %1426 = vmatpush1.msra.mxu0 0.0
  %1427 = vmatprep.subr.mxu0 0.0
  %1428 = vmatpush1.msra.mxu0 0.0
  %1429 = vmatprep.mubr.f32.mxu0 0.0
  %1430 = vmatmul.mubr.f32.gmra.mrb[0].mxu0 %v1363
  %v1431 = vpop.f32.mrb[0].mxu0
  %v1432 = vadd.f32 0.0, %v1431
  %v1433 = vpop.f32.mrb[0].mxu0
  %v1434 = vadd.f32 0.0, %v1433
  %1435 = vdwg.mxu0
  %v1436 = vsel %vm1361, %v1432, %v1434
  %v1437 = vadd.f32 %v1436, %v1341
  %v1438 = vxor.u32 %v1437, 2147483648
  %v1439 = vmul.f32 %v1438, 1.442695
  %v1440 = vpow.pop %v1439
  %v1441 = vadd.f32 %v1440, 1.0
  %v1442 = vrcp.pop %v1441
  %v1443 = vmul.f32 1.0, %v1442
  %v1444 = vtanh.pop %v1437
  %v1445 = vmul.f32 %v1443, 0.0
  %1447 = vrot.lane.b32.xlu0 %v1444, 64
  %v1448 = vpop.permute.xlu0 %1447
  %v1450 = vmul.f32 %v1443, %v1448
  %1452 = vrot.lane.b32.xlu0 %v1450, 32
  %v1453 = vpop.permute.xlu0 %1452
  %v1455 = vadd.f32 %v1445, %v1453
  %v1456 = vtanh.pop %v1455
  %1458 = vrot.lane.b32.xlu0 %v1456, 64
  %v1459 = vpop.permute.xlu0 %1458
  %v1461 = vmul.f32 %v1443, %v1459
  %1463 = vrot.lane.b32.xlu0 %v1461, 32
  %v1464 = vpop.permute.xlu0 %1463
  %v1465 = vsel %vm991, %v1464, 0
  %1467 = vmatprep.subr.mxu0 %v1352
  %1468 = vmatpush1.msra.mxu0 %v1351
  %1469 = vmatprep.subr.mxu0 %v1354
  %1470 = vmatpush1.msra.mxu0 %v1353
  %1471 = vmatprep.subr.mxu0 %v1356
  %1472 = vmatpush1.msra.mxu0 %v1355
  %1473 = vmatprep.subr.mxu0 %v1358
  %1474 = vmatpush1.msra.mxu0 %v1357
  %1475 = vmatprep.subr.mxu0 0.0
  %1476 = vmatpush1.msra.mxu0 0.0
  %1477 = vmatprep.subr.mxu0 0.0
  %1478 = vmatpush1.msra.mxu0 0.0
  %1479 = vmatprep.subr.mxu0 0.0
  %1480 = vmatpush1.msra.mxu0 0.0
  %1481 = vmatprep.subr.mxu0 0.0
  %1482 = vmatpush1.msra.mxu0 0.0
  %1483 = vmatprep.subr.mxu0 0.0
  %1484 = vmatpush1.msra.mxu0 0.0
  %1485 = vmatprep.subr.mxu0 0.0
  %1486 = vmatpush1.msra.mxu0 0.0
  %1487 = vmatprep.subr.mxu0 0.0
  %1488 = vmatpush1.msra.mxu0 0.0
  %1489 = vmatprep.subr.mxu0 0.0
  %1490 = vmatpush1.msra.mxu0 0.0
  %1491 = vmatprep.subr.mxu0 0.0
  %1492 = vmatpush1.msra.mxu0 0.0
  %1493 = vmatprep.subr.mxu0 0.0
  %1494 = vmatpush1.msra.mxu0 0.0
  %1495 = vmatprep.subr.mxu0 0.0
  %1496 = vmatpush1.msra.mxu0 0.0
  %1497 = vmatprep.subr.mxu0 0.0
  %1498 = vmatpush1.msra.mxu0 0.0
  %1499 = vmatprep.subr.mxu0 0.0
  %1500 = vmatpush1.msra.mxu0 0.0
  %1501 = vmatprep.subr.mxu0 0.0
  %1502 = vmatpush1.msra.mxu0 0.0
  %1503 = vmatprep.subr.mxu0 0.0
  %1504 = vmatpush1.msra.mxu0 0.0
  %1505 = vmatprep.subr.mxu0 0.0
  %1506 = vmatpush1.msra.mxu0 0.0
  %1507 = vmatprep.subr.mxu0 0.0
  %1508 = vmatpush1.msra.mxu0 0.0
  %1509 = vmatprep.subr.mxu0 0.0
  %1510 = vmatpush1.msra.mxu0 0.0
  %1511 = vmatprep.subr.mxu0 0.0
  %1512 = vmatpush1.msra.mxu0 0.0
  %1513 = vmatprep.subr.mxu0 0.0
  %1514 = vmatpush1.msra.mxu0 0.0
  %1515 = vmatprep.subr.mxu0 0.0
  %1516 = vmatpush1.msra.mxu0 0.0
  %1517 = vmatprep.subr.mxu0 0.0
  %1518 = vmatpush1.msra.mxu0 0.0
  %1519 = vmatprep.subr.mxu0 0.0
  %1520 = vmatpush1.msra.mxu0 0.0
  %1521 = vmatprep.subr.mxu0 0.0
  %1522 = vmatpush1.msra.mxu0 0.0
  %1523 = vmatprep.subr.mxu0 0.0
  %1524 = vmatpush1.msra.mxu0 0.0
  %1525 = vmatprep.subr.mxu0 0.0
  %1526 = vmatpush1.msra.mxu0 0.0
  %1527 = vmatprep.subr.mxu0 0.0
  %1528 = vmatpush1.msra.mxu0 0.0
  %1529 = vmatprep.subr.mxu0 0.0
  %1530 = vmatpush1.msra.mxu0 0.0
  %1531 = vmatprep.mubr.f32.mxu0 0.0
  %1532 = vmatmul.mubr.f32.gmra.mrb[0].mxu0 %v1465
  %v1533 = vpop.f32.mrb[0].mxu0
  %v1534 = vadd.f32 0.0, %v1533
  %v1535 = vpop.f32.mrb[0].mxu0
  %v1536 = vadd.f32 0.0, %v1535
  %1537 = vdwg.mxu0
  %v1538 = vsel %vm1361, %v1534, %v1536
  %v1540 = vrot.slane %v1341, 4
  %v1542 = vadd.f32 %v1538, %v1540
  %v1543 = vxor.u32 %v1542, 2147483648
  %v1544 = vmul.f32 %v1543, 1.442695
  %v1545 = vpow.pop %v1544
  %v1546 = vadd.f32 %v1545, 1.0
  %v1547 = vrcp.pop %v1546
  %v1548 = vmul.f32 1.0, %v1547
  %v1549 = vtanh.pop %v1542
  %v1550 = vmul.f32 %v1548, %v1455
  %1552 = vrot.lane.b32.xlu0 %v1549, 64
  %v1553 = vpop.permute.xlu0 %1552
  %v1555 = vmul.f32 %v1548, %v1553
  %1557 = vrot.lane.b32.xlu0 %v1555, 32
  %v1558 = vpop.permute.xlu0 %1557
  %v1560 = vadd.f32 %v1550, %v1558
  %v1561 = vtanh.pop %v1560
  %1563 = vrot.lane.b32.xlu0 %v1561, 64
  %v1564 = vpop.permute.xlu0 %1563
  %v1566 = vmul.f32 %v1548, %v1564
  %1568 = vrot.lane.b32.xlu0 %v1566, 32
  %v1569 = vpop.permute.xlu0 %1568
  %v1570 = vsel %vm991, %v1569, 0
  %1572 = vmatprep.subr.mxu0 %v1352
  %1573 = vmatpush1.msra.mxu0 %v1351
  %1574 = vmatprep.subr.mxu0 %v1354
  %1575 = vmatpush1.msra.mxu0 %v1353
  %1576 = vmatprep.subr.mxu0 %v1356
  %1577 = vmatpush1.msra.mxu0 %v1355
  %1578 = vmatprep.subr.mxu0 %v1358
  %1579 = vmatpush1.msra.mxu0 %v1357
  %1580 = vmatprep.subr.mxu0 0.0
  %1581 = vmatpush1.msra.mxu0 0.0
  %1582 = vmatprep.subr.mxu0 0.0
  %1583 = vmatpush1.msra.mxu0 0.0
  %1584 = vmatprep.subr.mxu0 0.0
  %1585 = vmatpush1.msra.mxu0 0.0
  %1586 = vmatprep.subr.mxu0 0.0
  %1587 = vmatpush1.msra.mxu0 0.0
  %1588 = vmatprep.subr.mxu0 0.0
  %1589 = vmatpush1.msra.mxu0 0.0
  %1590 = vmatprep.subr.mxu0 0.0
  %1591 = vmatpush1.msra.mxu0 0.0
  %1592 = vmatprep.subr.mxu0 0.0
  %1593 = vmatpush1.msra.mxu0 0.0
  %1594 = vmatprep.subr.mxu0 0.0
  %1595 = vmatpush1.msra.mxu0 0.0
  %1596 = vmatprep.subr.mxu0 0.0
  %1597 = vmatpush1.msra.mxu0 0.0
  %1598 = vmatprep.subr.mxu0 0.0
  %1599 = vmatpush1.msra.mxu0 0.0
  %1600 = vmatprep.subr.mxu0 0.0
  %1601 = vmatpush1.msra.mxu0 0.0
  %1602 = vmatprep.subr.mxu0 0.0
  %1603 = vmatpush1.msra.mxu0 0.0
  %1604 = vmatprep.subr.mxu0 0.0
  %1605 = vmatpush1.msra.mxu0 0.0
  %1606 = vmatprep.subr.mxu0 0.0
  %1607 = vmatpush1.msra.mxu0 0.0
  %1608 = vmatprep.subr.mxu0 0.0
  %1609 = vmatpush1.msra.mxu0 0.0
  %1610 = vmatprep.subr.mxu0 0.0
  %1611 = vmatpush1.msra.mxu0 0.0
  %1612 = vmatprep.subr.mxu0 0.0
  %1613 = vmatpush1.msra.mxu0 0.0
  %1614 = vmatprep.subr.mxu0 0.0
  %1615 = vmatpush1.msra.mxu0 0.0
  %1616 = vmatprep.subr.mxu0 0.0
  %1617 = vmatpush1.msra.mxu0 0.0
  %1618 = vmatprep.subr.mxu0 0.0
  %1619 = vmatpush1.msra.mxu0 0.0
  %1620 = vmatprep.subr.mxu0 0.0
  %1621 = vmatpush1.msra.mxu0 0.0
  %1622 = vmatprep.subr.mxu0 0.0
  %1623 = vmatpush1.msra.mxu0 0.0
  %1624 = vmatprep.subr.mxu0 0.0
  %1625 = vmatpush1.msra.mxu0 0.0
  %1626 = vmatprep.subr.mxu0 0.0
  %1627 = vmatpush1.msra.mxu0 0.0
  %1628 = vmatprep.subr.mxu0 0.0
  %1629 = vmatpush1.msra.mxu0 0.0
  %1630 = vmatprep.subr.mxu0 0.0
  %1631 = vmatpush1.msra.mxu0 0.0
  %1632 = vmatprep.subr.mxu0 0.0
  %1633 = vmatpush1.msra.mxu0 0.0
  %1634 = vmatprep.subr.mxu0 0.0
  %1635 = vmatpush1.msra.mxu0 0.0
  %1636 = vmatprep.mubr.f32.mxu0 0.0
  %1637 = vmatmul.mubr.f32.gmra.mrb[0].mxu0 %v1570
  %v1638 = vpop.f32.mrb[0].mxu0
  %v1639 = vadd.f32 0.0, %v1638
  %v1640 = vpop.f32.mrb[0].mxu0
  %v1641 = vadd.f32 0.0, %v1640
  %1642 = vdwg.mxu0
  %v1643 = vsel %vm1361, %v1639, %v1641
  %v1644 = vadd.f32 %v1643, %v1344
  %v1645 = vxor.u32 %v1644, 2147483648
  %v1646 = vmul.f32 %v1645, 1.442695
  %v1647 = vpow.pop %v1646
  %v1648 = vadd.f32 %v1647, 1.0
  %v1649 = vrcp.pop %v1648
  %v1650 = vmul.f32 1.0, %v1649
  %v1651 = vtanh.pop %v1644
  %v1652 = vmul.f32 %v1650, %v1560
  %1654 = vrot.lane.b32.xlu0 %v1651, 64
  %v1655 = vpop.permute.xlu0 %1654
  %v1657 = vmul.f32 %v1650, %v1655
  %1659 = vrot.lane.b32.xlu0 %v1657, 32
  %v1660 = vpop.permute.xlu0 %1659
  %v1662 = vadd.f32 %v1652, %v1660
  %v1663 = vtanh.pop %v1662
  %1665 = vrot.lane.b32.xlu0 %v1663, 64
  %v1666 = vpop.permute.xlu0 %1665
  %v1668 = vmul.f32 %v1650, %v1666
  %1670 = vrot.lane.b32.xlu0 %v1668, 32
  %v1671 = vpop.permute.xlu0 %1670
  %v1672 = vsel %vm991, %v1671, 0
  %1674 = vmatprep.subr.mxu0 %v1352
  %1675 = vmatpush1.msra.mxu0 %v1351
  %1676 = vmatprep.subr.mxu0 %v1354
  %1677 = vmatpush1.msra.mxu0 %v1353
  %1678 = vmatprep.subr.mxu0 %v1356
  %1679 = vmatpush1.msra.mxu0 %v1355
  %1680 = vmatprep.subr.mxu0 %v1358
  %1681 = vmatpush1.msra.mxu0 %v1357
  %1682 = vmatprep.subr.mxu0 0.0
  %1683 = vmatpush1.msra.mxu0 0.0
  %1684 = vmatprep.subr.mxu0 0.0
  %1685 = vmatpush1.msra.mxu0 0.0
  %1686 = vmatprep.subr.mxu0 0.0
  %1687 = vmatpush1.msra.mxu0 0.0
  %1688 = vmatprep.subr.mxu0 0.0
  %1689 = vmatpush1.msra.mxu0 0.0
  %1690 = vmatprep.subr.mxu0 0.0
  %1691 = vmatpush1.msra.mxu0 0.0
  %1692 = vmatprep.subr.mxu0 0.0
  %1693 = vmatpush1.msra.mxu0 0.0
  %1694 = vmatprep.subr.mxu0 0.0
  %1695 = vmatpush1.msra.mxu0 0.0
  %1696 = vmatprep.subr.mxu0 0.0
  %1697 = vmatpush1.msra.mxu0 0.0
  %1698 = vmatprep.subr.mxu0 0.0
  %1699 = vmatpush1.msra.mxu0 0.0
  %1700 = vmatprep.subr.mxu0 0.0
  %1701 = vmatpush1.msra.mxu0 0.0
  %1702 = vmatprep.subr.mxu0 0.0
  %1703 = vmatpush1.msra.mxu0 0.0
  %1704 = vmatprep.subr.mxu0 0.0
  %1705 = vmatpush1.msra.mxu0 0.0
  %1706 = vmatprep.subr.mxu0 0.0
  %1707 = vmatpush1.msra.mxu0 0.0
  %1708 = vmatprep.subr.mxu0 0.0
  %1709 = vmatpush1.msra.mxu0 0.0
  %1710 = vmatprep.subr.mxu0 0.0
  %1711 = vmatpush1.msra.mxu0 0.0
  %1712 = vmatprep.subr.mxu0 0.0
  %1713 = vmatpush1.msra.mxu0 0.0
  %1714 = vmatprep.subr.mxu0 0.0
  %1715 = vmatpush1.msra.mxu0 0.0
  %1716 = vmatprep.subr.mxu0 0.0
  %1717 = vmatpush1.msra.mxu0 0.0
  %1718 = vmatprep.subr.mxu0 0.0
  %1719 = vmatpush1.msra.mxu0 0.0
  %1720 = vmatprep.subr.mxu0 0.0
  %1721 = vmatpush1.msra.mxu0 0.0
  %1722 = vmatprep.subr.mxu0 0.0
  %1723 = vmatpush1.msra.mxu0 0.0
  %1724 = vmatprep.subr.mxu0 0.0
  %1725 = vmatpush1.msra.mxu0 0.0
  %1726 = vmatprep.subr.mxu0 0.0
  %1727 = vmatpush1.msra.mxu0 0.0
  %1728 = vmatprep.subr.mxu0 0.0
  %1729 = vmatpush1.msra.mxu0 0.0
  %1730 = vmatprep.subr.mxu0 0.0
  %1731 = vmatpush1.msra.mxu0 0.0
  %1732 = vmatprep.subr.mxu0 0.0
  %1733 = vmatpush1.msra.mxu0 0.0
  %1734 = vmatprep.subr.mxu0 0.0
  %1735 = vmatpush1.msra.mxu0 0.0
  %1736 = vmatprep.subr.mxu0 0.0
  %1737 = vmatpush1.msra.mxu0 0.0
  %1738 = vmatprep.mubr.f32.mxu0 0.0
  %1739 = vmatmul.mubr.f32.gmra.mrb[0].mxu0 %v1672
  %v1740 = vpop.f32.mrb[0].mxu0
  %v1741 = vadd.f32 0.0, %v1740
  %v1742 = vpop.f32.mrb[0].mxu0
  %v1743 = vadd.f32 0.0, %v1742
  %1744 = vdwg.mxu0
  %v1745 = vsel %vm1361, %v1741, %v1743
  %v1747 = vrot.slane %v1344, 4
  %v1749 = vadd.f32 %v1745, %v1747
  %v1750 = vxor.u32 %v1749, 2147483648
  %v1751 = vmul.f32 %v1750, 1.442695
  %v1752 = vpow.pop %v1751
  %v1753 = vadd.f32 %v1752, 1.0
  %v1754 = vrcp.pop %v1753
  %v1755 = vmul.f32 1.0, %v1754
  %v1756 = vtanh.pop %v1749
  %v1757 = vmul.f32 %v1755, %v1662
  %1759 = vrot.lane.b32.xlu0 %v1756, 64
  %v1760 = vpop.permute.xlu0 %1759
  %v1762 = vmul.f32 %v1755, %v1760
  %1764 = vrot.lane.b32.xlu0 %v1762, 32
  %v1765 = vpop.permute.xlu0 %1764
  %v1767 = vadd.f32 %v1757, %v1765
  %v1768 = vtanh.pop %v1767
  %1770 = vrot.lane.b32.xlu0 %v1768, 64
  %v1771 = vpop.permute.xlu0 %1770
  %v1773 = vmul.f32 %v1755, %v1771
  %1775 = vrot.lane.b32.xlu0 %v1773, 32
  %v1776 = vpop.permute.xlu0 %1775
  %v1777 = vsel %vm991, %v1776, 0
  %1779 = vmatprep.subr.mxu0 %v1352
  %1780 = vmatpush1.msra.mxu0 %v1351
  %1781 = vmatprep.subr.mxu0 %v1354
  %1782 = vmatpush1.msra.mxu0 %v1353
  %1783 = vmatprep.subr.mxu0 %v1356
  %1784 = vmatpush1.msra.mxu0 %v1355
  %1785 = vmatprep.subr.mxu0 %v1358
  %1786 = vmatpush1.msra.mxu0 %v1357
  %1787 = vmatprep.subr.mxu0 0.0
  %1788 = vmatpush1.msra.mxu0 0.0
  %1789 = vmatprep.subr.mxu0 0.0
  %1790 = vmatpush1.msra.mxu0 0.0
  %1791 = vmatprep.subr.mxu0 0.0
  %1792 = vmatpush1.msra.mxu0 0.0
  %1793 = vmatprep.subr.mxu0 0.0
  %1794 = vmatpush1.msra.mxu0 0.0
  %1795 = vmatprep.subr.mxu0 0.0
  %1796 = vmatpush1.msra.mxu0 0.0
  %1797 = vmatprep.subr.mxu0 0.0
  %1798 = vmatpush1.msra.mxu0 0.0
  %1799 = vmatprep.subr.mxu0 0.0
  %1800 = vmatpush1.msra.mxu0 0.0
  %1801 = vmatprep.subr.mxu0 0.0
  %1802 = vmatpush1.msra.mxu0 0.0
  %1803 = vmatprep.subr.mxu0 0.0
  %1804 = vmatpush1.msra.mxu0 0.0
  %1805 = vmatprep.subr.mxu0 0.0
  %1806 = vmatpush1.msra.mxu0 0.0
  %1807 = vmatprep.subr.mxu0 0.0
  %1808 = vmatpush1.msra.mxu0 0.0
  %1809 = vmatprep.subr.mxu0 0.0
  %1810 = vmatpush1.msra.mxu0 0.0
  %1811 = vmatprep.subr.mxu0 0.0
  %1812 = vmatpush1.msra.mxu0 0.0
  %1813 = vmatprep.subr.mxu0 0.0
  %1814 = vmatpush1.msra.mxu0 0.0
  %1815 = vmatprep.subr.mxu0 0.0
  %1816 = vmatpush1.msra.mxu0 0.0
  %1817 = vmatprep.subr.mxu0 0.0
  %1818 = vmatpush1.msra.mxu0 0.0
  %1819 = vmatprep.subr.mxu0 0.0
  %1820 = vmatpush1.msra.mxu0 0.0
  %1821 = vmatprep.subr.mxu0 0.0
  %1822 = vmatpush1.msra.mxu0 0.0
  %1823 = vmatprep.subr.mxu0 0.0
  %1824 = vmatpush1.msra.mxu0 0.0
  %1825 = vmatprep.subr.mxu0 0.0
  %1826 = vmatpush1.msra.mxu0 0.0
  %1827 = vmatprep.subr.mxu0 0.0
  %1828 = vmatpush1.msra.mxu0 0.0
  %1829 = vmatprep.subr.mxu0 0.0
  %1830 = vmatpush1.msra.mxu0 0.0
  %1831 = vmatprep.subr.mxu0 0.0
  %1832 = vmatpush1.msra.mxu0 0.0
  %1833 = vmatprep.subr.mxu0 0.0
  %1834 = vmatpush1.msra.mxu0 0.0
  %1835 = vmatprep.subr.mxu0 0.0
  %1836 = vmatpush1.msra.mxu0 0.0
  %1837 = vmatprep.subr.mxu0 0.0
  %1838 = vmatpush1.msra.mxu0 0.0
  %1839 = vmatprep.subr.mxu0 0.0
  %1840 = vmatpush1.msra.mxu0 0.0
  %1841 = vmatprep.subr.mxu0 0.0
  %1842 = vmatpush1.msra.mxu0 0.0
  %1843 = vmatprep.mubr.f32.mxu0 0.0
  %1844 = vmatmul.mubr.f32.gmra.mrb[0].mxu0 %v1777
  %v1845 = vpop.f32.mrb[0].mxu0
  %v1846 = vadd.f32 0.0, %v1845
  %v1847 = vpop.f32.mrb[0].mxu0
  %v1848 = vadd.f32 0.0, %v1847
  %1849 = vdwg.mxu0
  %v1850 = vsel %vm1361, %v1846, %v1848
  %v1851 = vadd.f32 %v1850, %v1347
  %v1852 = vxor.u32 %v1851, 2147483648
  %v1853 = vmul.f32 %v1852, 1.442695
  %v1854 = vpow.pop %v1853
  %v1855 = vadd.f32 %v1854, 1.0
  %v1856 = vrcp.pop %v1855
  %v1857 = vmul.f32 1.0, %v1856
  %v1858 = vtanh.pop %v1851
  %v1859 = vmul.f32 %v1857, %v1767
  %1861 = vrot.lane.b32.xlu0 %v1858, 64
  %v1862 = vpop.permute.xlu0 %1861
  %v1864 = vmul.f32 %v1857, %v1862
  %1866 = vrot.lane.b32.xlu0 %v1864, 32
  %v1867 = vpop.permute.xlu0 %1866
  %v1869 = vadd.f32 %v1859, %v1867
  %v1870 = vtanh.pop %v1869
  %1872 = vrot.lane.b32.xlu0 %v1870, 64
  %v1873 = vpop.permute.xlu0 %1872
  %v1875 = vmul.f32 %v1857, %v1873
  %1877 = vrot.lane.b32.xlu0 %v1875, 32
  %v1878 = vpop.permute.xlu0 %1877
  %v1879 = vsel %vm991, %v1878, 0
  %1881 = vmatprep.subr.mxu0 %v1352
  %1882 = vmatpush1.msra.mxu0 %v1351
  %1883 = vmatprep.subr.mxu0 %v1354
  %1884 = vmatpush1.msra.mxu0 %v1353
  %1885 = vmatprep.subr.mxu0 %v1356
  %1886 = vmatpush1.msra.mxu0 %v1355
  %1887 = vmatprep.subr.mxu0 %v1358
  %1888 = vmatpush1.msra.mxu0 %v1357
  %1889 = vmatprep.subr.mxu0 0.0
  %1890 = vmatpush1.msra.mxu0 0.0
  %1891 = vmatprep.subr.mxu0 0.0
  %1892 = vmatpush1.msra.mxu0 0.0
  %1893 = vmatprep.subr.mxu0 0.0
  %1894 = vmatpush1.msra.mxu0 0.0
  %1895 = vmatprep.subr.mxu0 0.0
  %1896 = vmatpush1.msra.mxu0 0.0
  %1897 = vmatprep.subr.mxu0 0.0
  %1898 = vmatpush1.msra.mxu0 0.0
  %1899 = vmatprep.subr.mxu0 0.0
  %1900 = vmatpush1.msra.mxu0 0.0
  %1901 = vmatprep.subr.mxu0 0.0
  %1902 = vmatpush1.msra.mxu0 0.0
  %1903 = vmatprep.subr.mxu0 0.0
  %1904 = vmatpush1.msra.mxu0 0.0
  %1905 = vmatprep.subr.mxu0 0.0
  %1906 = vmatpush1.msra.mxu0 0.0
  %1907 = vmatprep.subr.mxu0 0.0
  %1908 = vmatpush1.msra.mxu0 0.0
  %1909 = vmatprep.subr.mxu0 0.0
  %1910 = vmatpush1.msra.mxu0 0.0
  %1911 = vmatprep.subr.mxu0 0.0
  %1912 = vmatpush1.msra.mxu0 0.0
  %1913 = vmatprep.subr.mxu0 0.0
  %1914 = vmatpush1.msra.mxu0 0.0
  %1915 = vmatprep.subr.mxu0 0.0
  %1916 = vmatpush1.msra.mxu0 0.0
  %1917 = vmatprep.subr.mxu0 0.0
  %1918 = vmatpush1.msra.mxu0 0.0
  %1919 = vmatprep.subr.mxu0 0.0
  %1920 = vmatpush1.msra.mxu0 0.0
  %1921 = vmatprep.subr.mxu0 0.0
  %1922 = vmatpush1.msra.mxu0 0.0
  %1923 = vmatprep.subr.mxu0 0.0
  %1924 = vmatpush1.msra.mxu0 0.0
  %1925 = vmatprep.subr.mxu0 0.0
  %1926 = vmatpush1.msra.mxu0 0.0
  %1927 = vmatprep.subr.mxu0 0.0
  %1928 = vmatpush1.msra.mxu0 0.0
  %1929 = vmatprep.subr.mxu0 0.0
  %1930 = vmatpush1.msra.mxu0 0.0
  %1931 = vmatprep.subr.mxu0 0.0
  %1932 = vmatpush1.msra.mxu0 0.0
  %1933 = vmatprep.subr.mxu0 0.0
  %1934 = vmatpush1.msra.mxu0 0.0
  %1935 = vmatprep.subr.mxu0 0.0
  %1936 = vmatpush1.msra.mxu0 0.0
  %1937 = vmatprep.subr.mxu0 0.0
  %1938 = vmatpush1.msra.mxu0 0.0
  %1939 = vmatprep.subr.mxu0 0.0
  %1940 = vmatpush1.msra.mxu0 0.0
  %1941 = vmatprep.subr.mxu0 0.0
  %1942 = vmatpush1.msra.mxu0 0.0
  %1943 = vmatprep.subr.mxu0 0.0
  %1944 = vmatpush1.msra.mxu0 0.0
  %1945 = vmatprep.mubr.f32.mxu0 0.0
  %1946 = vmatmul.mubr.f32.gmra.mrb[0].mxu0 %v1879
  %v1947 = vpop.f32.mrb[0].mxu0
  %v1948 = vadd.f32 0.0, %v1947
  %v1949 = vpop.f32.mrb[0].mxu0
  %v1950 = vadd.f32 0.0, %v1949
  %1951 = vdwg.mxu0
  %v1952 = vsel %vm1361, %v1948, %v1950
  %v1954 = vrot.slane %v1347, 4
  %v1956 = vadd.f32 %v1952, %v1954
  %v1957 = vxor.u32 %v1956, 2147483648
  %v1958 = vmul.f32 %v1957, 1.442695
  %v1959 = vpow.pop %v1958
  %v1960 = vadd.f32 %v1959, 1.0
  %v1961 = vrcp.pop %v1960
  %v1962 = vmul.f32 1.0, %v1961
  %v1963 = vtanh.pop %v1956
  %v1964 = vmul.f32 %v1962, %v1869
  %1966 = vrot.lane.b32.xlu0 %v1963, 64
  %v1967 = vpop.permute.xlu0 %1966
  %v1969 = vmul.f32 %v1962, %v1967
  %1971 = vrot.lane.b32.xlu0 %v1969, 32
  %v1972 = vpop.permute.xlu0 %1971
  %v1974 = vadd.f32 %v1964, %v1972
  %v1975 = vtanh.pop %v1974
  %1977 = vrot.lane.b32.xlu0 %v1975, 64
  %v1978 = vpop.permute.xlu0 %1977
  %v1980 = vmul.f32 %v1962, %v1978
  %1982 = vrot.lane.b32.xlu0 %v1980, 32
  %v1983 = vpop.permute.xlu0 %1982
  %v1984 = vsel %vm991, %v1983, 0
  %1986 = vmatprep.subr.mxu0 %v1352
  %1987 = vmatpush1.msra.mxu0 %v1351
  %1988 = vmatprep.subr.mxu0 %v1354
  %1989 = vmatpush1.msra.mxu0 %v1353
  %1990 = vmatprep.subr.mxu0 %v1356
  %1991 = vmatpush1.msra.mxu0 %v1355
  %1992 = vmatprep.subr.mxu0 %v1358
  %1993 = vmatpush1.msra.mxu0 %v1357
  %1994 = vmatprep.subr.mxu0 0.0
  %1995 = vmatpush1.msra.mxu0 0.0
  %1996 = vmatprep.subr.mxu0 0.0
  %1997 = vmatpush1.msra.mxu0 0.0
  %1998 = vmatprep.subr.mxu0 0.0
  %1999 = vmatpush1.msra.mxu0 0.0
  %2000 = vmatprep.subr.mxu0 0.0
  %2001 = vmatpush1.msra.mxu0 0.0
  %2002 = vmatprep.subr.mxu0 0.0
  %2003 = vmatpush1.msra.mxu0 0.0
  %2004 = vmatprep.subr.mxu0 0.0
  %2005 = vmatpush1.msra.mxu0 0.0
  %2006 = vmatprep.subr.mxu0 0.0
  %2007 = vmatpush1.msra.mxu0 0.0
  %2008 = vmatprep.subr.mxu0 0.0
  %2009 = vmatpush1.msra.mxu0 0.0
  %2010 = vmatprep.subr.mxu0 0.0
  %2011 = vmatpush1.msra.mxu0 0.0
  %2012 = vmatprep.subr.mxu0 0.0
  %2013 = vmatpush1.msra.mxu0 0.0
  %2014 = vmatprep.subr.mxu0 0.0
  %2015 = vmatpush1.msra.mxu0 0.0
  %2016 = vmatprep.subr.mxu0 0.0
  %2017 = vmatpush1.msra.mxu0 0.0
  %2018 = vmatprep.subr.mxu0 0.0
  %2019 = vmatpush1.msra.mxu0 0.0
  %2020 = vmatprep.subr.mxu0 0.0
  %2021 = vmatpush1.msra.mxu0 0.0
  %2022 = vmatprep.subr.mxu0 0.0
  %2023 = vmatpush1.msra.mxu0 0.0
  %2024 = vmatprep.subr.mxu0 0.0
  %2025 = vmatpush1.msra.mxu0 0.0
  %2026 = vmatprep.subr.mxu0 0.0
  %2027 = vmatpush1.msra.mxu0 0.0
  %2028 = vmatprep.subr.mxu0 0.0
  %2029 = vmatpush1.msra.mxu0 0.0
  %2030 = vmatprep.subr.mxu0 0.0
  %2031 = vmatpush1.msra.mxu0 0.0
  %2032 = vmatprep.subr.mxu0 0.0
  %2033 = vmatpush1.msra.mxu0 0.0
  %2034 = vmatprep.subr.mxu0 0.0
  %2035 = vmatpush1.msra.mxu0 0.0
  %2036 = vmatprep.subr.mxu0 0.0
  %2037 = vmatpush1.msra.mxu0 0.0
  %2038 = vmatprep.subr.mxu0 0.0
  %2039 = vmatpush1.msra.mxu0 0.0
  %2040 = vmatprep.subr.mxu0 0.0
  %2041 = vmatpush1.msra.mxu0 0.0
  %2042 = vmatprep.subr.mxu0 0.0
  %2043 = vmatpush1.msra.mxu0 0.0
  %2044 = vmatprep.subr.mxu0 0.0
  %2045 = vmatpush1.msra.mxu0 0.0
  %2046 = vmatprep.subr.mxu0 0.0
  %2047 = vmatpush1.msra.mxu0 0.0
  %2048 = vmatprep.subr.mxu0 0.0
  %2049 = vmatpush1.msra.mxu0 0.0
  %2050 = vmatprep.mubr.f32.mxu0 0.0
  %2051 = vmatmul.mubr.f32.gmra.mrb[0].mxu0 %v1984
  %v2052 = vpop.f32.mrb[0].mxu0
  %v2053 = vadd.f32 0.0, %v2052
  %v2054 = vpop.f32.mrb[0].mxu0
  %v2055 = vadd.f32 0.0, %v2054
  %2056 = vdwg.mxu0
  %v2057 = vsel %vm1361, %v2053, %v2055
  %v2058 = vadd.f32 %v2057, %v1350
  %v2059 = vxor.u32 %v2058, 2147483648
  %v2060 = vmul.f32 %v2059, 1.442695
  %v2061 = vpow.pop %v2060
  %v2062 = vadd.f32 %v2061, 1.0
  %v2063 = vrcp.pop %v2062
  %v2064 = vmul.f32 1.0, %v2063
  %v2065 = vtanh.pop %v2058
  %v2066 = vmul.f32 %v2064, %v1974
  %2068 = vrot.lane.b32.xlu0 %v2065, 64
  %v2069 = vpop.permute.xlu0 %2068
  %v2071 = vmul.f32 %v2064, %v2069
  %2073 = vrot.lane.b32.xlu0 %v2071, 32
  %v2074 = vpop.permute.xlu0 %2073
  %v2076 = vadd.f32 %v2066, %v2074
  %v2077 = vtanh.pop %v2076
  %2079 = vrot.lane.b32.xlu0 %v2077, 64
  %v2080 = vpop.permute.xlu0 %2079
  %v2082 = vmul.f32 %v2064, %v2080
  %2084 = vrot.lane.b32.xlu0 %v2082, 32
  %v2085 = vpop.permute.xlu0 %2084
  %v2086 = vsel %vm991, %v2085, 0
  %2088 = vmatprep.subr.mxu0 %v1352
  %2089 = vmatpush1.msra.mxu0 %v1351
  %2090 = vmatprep.subr.mxu0 %v1354
  %2091 = vmatpush1.msra.mxu0 %v1353
  %2092 = vmatprep.subr.mxu0 %v1356
  %2093 = vmatpush1.msra.mxu0 %v1355
  %2094 = vmatprep.subr.mxu0 %v1358
  %2095 = vmatpush1.msra.mxu0 %v1357
  %2096 = vmatprep.subr.mxu0 0.0
  %2097 = vmatpush1.msra.mxu0 0.0
  %2098 = vmatprep.subr.mxu0 0.0
  %2099 = vmatpush1.msra.mxu0 0.0
  %2100 = vmatprep.subr.mxu0 0.0
  %2101 = vmatpush1.msra.mxu0 0.0
  %2102 = vmatprep.subr.mxu0 0.0
  %2103 = vmatpush1.msra.mxu0 0.0
  %2104 = vmatprep.subr.mxu0 0.0
  %2105 = vmatpush1.msra.mxu0 0.0
  %2106 = vmatprep.subr.mxu0 0.0
  %2107 = vmatpush1.msra.mxu0 0.0
  %2108 = vmatprep.subr.mxu0 0.0
  %2109 = vmatpush1.msra.mxu0 0.0
  %2110 = vmatprep.subr.mxu0 0.0
  %2111 = vmatpush1.msra.mxu0 0.0
  %2112 = vmatprep.subr.mxu0 0.0
  %2113 = vmatpush1.msra.mxu0 0.0
  %2114 = vmatprep.subr.mxu0 0.0
  %2115 = vmatpush1.msra.mxu0 0.0
  %2116 = vmatprep.subr.mxu0 0.0
  %2117 = vmatpush1.msra.mxu0 0.0
  %2118 = vmatprep.subr.mxu0 0.0
  %2119 = vmatpush1.msra.mxu0 0.0
  %2120 = vmatprep.subr.mxu0 0.0
  %2121 = vmatpush1.msra.mxu0 0.0
  %2122 = vmatprep.subr.mxu0 0.0
  %2123 = vmatpush1.msra.mxu0 0.0
  %2124 = vmatprep.subr.mxu0 0.0
  %2125 = vmatpush1.msra.mxu0 0.0
  %2126 = vmatprep.subr.mxu0 0.0
  %2127 = vmatpush1.msra.mxu0 0.0
  %2128 = vmatprep.subr.mxu0 0.0
  %2129 = vmatpush1.msra.mxu0 0.0
  %2130 = vmatprep.subr.mxu0 0.0
  %2131 = vmatpush1.msra.mxu0 0.0
  %2132 = vmatprep.subr.mxu0 0.0
  %2133 = vmatpush1.msra.mxu0 0.0
  %2134 = vmatprep.subr.mxu0 0.0
  %2135 = vmatpush1.msra.mxu0 0.0
  %2136 = vmatprep.subr.mxu0 0.0
  %2137 = vmatpush1.msra.mxu0 0.0
  %2138 = vmatprep.subr.mxu0 0.0
  %2139 = vmatpush1.msra.mxu0 0.0
  %2140 = vmatprep.subr.mxu0 0.0
  %2141 = vmatpush1.msra.mxu0 0.0
  %2142 = vmatprep.subr.mxu0 0.0
  %2143 = vmatpush1.msra.mxu0 0.0
  %2144 = vmatprep.subr.mxu0 0.0
  %2145 = vmatpush1.msra.mxu0 0.0
  %2146 = vmatprep.subr.mxu0 0.0
  %2147 = vmatpush1.msra.mxu0 0.0
  %2148 = vmatprep.subr.mxu0 0.0
  %2149 = vmatpush1.msra.mxu0 0.0
  %2150 = vmatprep.subr.mxu0 0.0
  %2151 = vmatpush1.msra.mxu0 0.0
  %2152 = vmatprep.mubr.f32.mxu0 0.0
  %2153 = vmatmul.mubr.f32.gmra.mrb[0].mxu0 %v2086
  %v2154 = vpop.f32.mrb[0].mxu0
  %v2155 = vadd.f32 0.0, %v2154
  %v2156 = vpop.f32.mrb[0].mxu0
  %v2157 = vadd.f32 0.0, %v2156
  %2158 = vdwg.mxu0
  %v2159 = vsel %vm1361, %v2155, %v2157
  %v2161 = vrot.slane %v1350, 4
  %v2163 = vadd.f32 %v2159, %v2161
  %v2164 = vxor.u32 %v2163, 2147483648
  %v2165 = vmul.f32 %v2164, 1.442695
  %v2166 = vpow.pop %v2165
  %v2167 = vadd.f32 %v2166, 1.0
  %v2168 = vrcp.pop %v2167
  %v2169 = vmul.f32 1.0, %v2168
  %v2170 = vtanh.pop %v2163
  %v2171 = vmul.f32 %v2169, %v2076
  %2173 = vrot.lane.b32.xlu0 %v2170, 64
  %v2174 = vpop.permute.xlu0 %2173
  %v2176 = vmul.f32 %v2169, %v2174
  %2178 = vrot.lane.b32.xlu0 %v2176, 32
  %v2179 = vpop.permute.xlu0 %2178
  %v2181 = vadd.f32 %v2171, %v2179
  %v2182 = vtanh.pop %v2181
  %2184 = vrot.lane.b32.xlu0 %v2182, 64
  %v2185 = vpop.permute.xlu0 %2184
  %v2187 = vmul.f32 %v2169, %v2185
  %v2188 = vrot.slane %v1566, 6
  %v2190 = vrot.slane %v1668, 4
  %v2192 = vrot.slane %v1773, 2
  %v2194 = vrot.slane %v1980, 6
  %v2196 = vrot.slane %v2082, 4
  %v2199 = vrot.slane %v2187, 2
  %v2201 = vsel %vm1337, %v1461, %v2188
  %v2202 = vsel %vm619, %v2201, %v2190
  %v2203 = vsel %vm1340, %v2202, %v2192
  %v2204 = vsel %vm1337, %v1875, %v2194
  %v2205 = vsel %vm619, %v2204, %v2196
  %v2206 = vsel %vm1340, %v2205, %v2199
  %v2207 = vrot.slane %v1875, 4
  %v2209 = vrot.slane %v1461, 4
  %v2211 = vsel %vm1337, %v2199, %v2082
  %v2212 = vsel %vm619, %v2211, %v2194
  %v2213 = vsel %vm1340, %v2212, %v2207
  %v2214 = vsel %vm1337, %v2192, %v1668
  %v2215 = vsel %vm619, %v2214, %v2188
  %v2216 = vsel %vm1340, %v2215, %v2209
  %2219 = vrot.lane.b32.xlu0 %v2203, 32
  %v2220 = vpop.permute.xlu0 %2219
  %2221 = vrot.lane.b32.xlu0 %v2206, 32
  %v2222 = vpop.permute.xlu0 %2221
  %2227 = vrot.lane.b32.xlu0 %v2213, 64
  %v2228 = vpop.permute.xlu0 %2227
  %2229 = vrot.lane.b32.xlu0 %v2216, 64
  %v2230 = vpop.permute.xlu0 %2229
  %v2233 = vsel %vm991, %v2220, %v2228
  %v2234 = vsel %vm991, %v2222, %v2230
  %v2235 = vld [vmem:[%s2 + $0x80] sm:$0xff]
  %v2236 = vld [vmem:[%s2 + $0x90] sm:$0xff]
  %v2237 = vld [vmem:[%s2 + $0xa0] sm:$0xff]
  %v2238 = vld [vmem:[%s2 + $0xb0] sm:$0xff]
  %v2239 = vld [vmem:[%s2 + $0xc0] sm:$0xff]
  %v2240 = vld [vmem:[%s2 + $0xd0] sm:$0xff]
  %v2241 = vld [vmem:[%s2 + $0xe0] sm:$0xff]
  %v2242 = vld [vmem:[%s2 + $0xf0] sm:$0xff]
  %v2243 = vld [vmem:[%s3 + $0x2] sm:$0x1]
  %v2244 = vlaneseq
  %v2245 = vshrl.u32 %v2244, 7
  %v2246 = vsub.s32 0, %v2245
  %v2247 = vrot.slane %v2243, %v2246
  %vm2248 = vcmask 523264
  %v2250 = vsel %vm2248, %v2233, 0
  %v2253 = vsel %vm2248, %v2234, 0
  %2255 = vmatprep.subr.mxu0 0.0
  %2256 = vmatpush1.msra.mxu0 %v2235
  %2257 = vmatprep.subr.mxu0 0.0
  %2258 = vmatpush1.msra.mxu0 %v2236
  %2259 = vmatprep.subr.mxu0 0.0
  %2260 = vmatpush1.msra.mxu0 %v2237
  %2261 = vmatprep.subr.mxu0 0.0
  %2262 = vmatpush1.msra.mxu0 %v2238
  %2263 = vmatprep.subr.mxu0 0.0
  %2264 = vmatpush1.msra.mxu0 %v2239
  %2265 = vmatprep.subr.mxu0 0.0
  %2266 = vmatpush1.msra.mxu0 %v2240
  %2267 = vmatprep.subr.mxu0 0.0
  %2268 = vmatpush1.msra.mxu0 %v2241
  %2269 = vmatprep.subr.mxu0 0.0
  %2270 = vmatpush1.msra.mxu0 %v2242
  %2271 = vmatprep.subr.mxu0 0.0
  %2272 = vmatpush1.msra.mxu0 0.0
  %2273 = vmatprep.subr.mxu0 0.0
  %2274 = vmatpush1.msra.mxu0 0.0
  %2275 = vmatprep.subr.mxu0 0.0
  %2276 = vmatpush1.msra.mxu0 0.0
  %2277 = vmatprep.subr.mxu0 0.0
  %2278 = vmatpush1.msra.mxu0 0.0
  %2279 = vmatprep.subr.mxu0 0.0
  %2280 = vmatpush1.msra.mxu0 0.0
  %2281 = vmatprep.subr.mxu0 0.0
  %2282 = vmatpush1.msra.mxu0 0.0
  %2283 = vmatprep.subr.mxu0 0.0
  %2284 = vmatpush1.msra.mxu0 0.0
  %2285 = vmatprep.subr.mxu0 0.0
  %2286 = vmatpush1.msra.mxu0 0.0
  %2287 = vmatprep.subr.mxu0 0.0
  %2288 = vmatpush1.msra.mxu0 0.0
  %2289 = vmatprep.subr.mxu0 0.0
  %2290 = vmatpush1.msra.mxu0 0.0
  %2291 = vmatprep.subr.mxu0 0.0
  %2292 = vmatpush1.msra.mxu0 0.0
  %2293 = vmatprep.subr.mxu0 0.0
  %2294 = vmatpush1.msra.mxu0 0.0
  %2295 = vmatprep.subr.mxu0 0.0
  %2296 = vmatpush1.msra.mxu0 0.0
  %2297 = vmatprep.subr.mxu0 0.0
  %2298 = vmatpush1.msra.mxu0 0.0
  %2299 = vmatprep.subr.mxu0 0.0
  %2300 = vmatpush1.msra.mxu0 0.0
  %2301 = vmatprep.subr.mxu0 0.0
  %2302 = vmatpush1.msra.mxu0 0.0
  %2303 = vmatprep.subr.mxu0 0.0
  %2304 = vmatpush1.msra.mxu0 0.0
  %2305 = vmatprep.subr.mxu0 0.0
  %2306 = vmatpush1.msra.mxu0 0.0
  %2307 = vmatprep.subr.mxu0 0.0
  %2308 = vmatpush1.msra.mxu0 0.0
  %2309 = vmatprep.subr.mxu0 0.0
  %2310 = vmatpush1.msra.mxu0 0.0
  %2311 = vmatprep.subr.mxu0 0.0
  %2312 = vmatpush1.msra.mxu0 0.0
  %2313 = vmatprep.subr.mxu0 0.0
  %2314 = vmatpush1.msra.mxu0 0.0
  %2315 = vmatprep.subr.mxu0 0.0
  %2316 = vmatpush1.msra.mxu0 0.0
  %2317 = vmatprep.subr.mxu0 0.0
  %2318 = vmatpush1.msra.mxu0 0.0
  %2319 = vmatprep.mubr.f32.mxu0 0.0
  %2320 = vmatmul.mubr.f32.gmra.mrb[0].mxu0 %v2250
  %v2321 = vpop.f32.mrb[0].mxu0
  %v2322 = vadd.f32 %v2247, %v2321
  %v2323 = vpop.f32.mrb[0].mxu0
  %2324 = vmatprep.mubr.f32.mxu0 0.0
  %2325 = vmatmul.mubr.f32.gmra.mrb[0].mxu0 %v2253
  %v2326 = vpop.f32.mrb[0].mxu0
  %v2327 = vadd.f32 %v2247, %v2326
  %v2328 = vpop.f32.mrb[0].mxu0
  %2329 = vdwg.mxu0
  %2330 = vmax.xlane.f32.xlu0 %v2322
  %v2331 = vpop.xlane.xlu0 %2330
  %2332 = vmax.xlane.f32.xlu0 %v2327
  %v2333 = vpop.xlane.xlu0 %2332
  %v2334 = vsub.f32 %v2322, %v2331
  %v2335 = vsub.f32 %v2327, %v2333
  %v2336 = vmul.f32 %v2334, 1.442695
  %v2337 = vpow.pop %v2336
  %v2338 = vmul.f32 %v2335, 1.442695
  %v2339 = vpow.pop %v2338
  %2340 = vadd.xlane.f32.xlu0 %v2337
  %v2341 = vpop.xlane.xlu0 %2340
  %2342 = vadd.xlane.f32.xlu0 %v2339
  %v2343 = vpop.xlane.xlu0 %2342
  %v2344 = vlog2.pop %v2341
  %v2345 = vmul.f32 %v2344, 0.6931472
  %v2346 = vlog2.pop %v2343
  %v2347 = vmul.f32 %v2346, 0.6931472
  %v2348 = vadd.f32 %v2331, %v2345
  %v2349 = vadd.f32 %v2333, %v2347
  %v2350 = vsub.f32 %v2322, %v2348
  %v2351 = vsub.f32 %v2327, %v2349
  %2352 = vst [vmem:[%s4] sm:$0xff] %v2350
  %2353 = vst [vmem:[%s4 + $0x8] sm:$0xff] %v2351
  // Predicated region
  $region18: #{pos_tagger_forward.1} parent=0 // pred_check
    _
  $region19: #{pos_tagger_forward.1} parent=0 // pred_check_branch
    %2355 = sbr.rel (0) target = $region21
  $region20: #{pos_tagger_forward.1} parent=0 // pred_region
    _
  $region21: #{pos_tagger_forward.1} parent=0 // pred_fallthru
    _
  // Predicated region
  $region22: #{pos_tagger_forward.1} parent=0 // pred_check
    _
  $region23: #{pos_tagger_forward.1} parent=0 // pred_check_branch
    %2357 = sbr.rel (0) target = $region25
  $region24: #{pos_tagger_forward.1} parent=0 // pred_region
    _
  $region25: #{pos_tagger_forward.1} parent=0 // pred_fallthru
    _

</llo_original>
